<compile_context>
chip_gen: v5e
topology: v5e:2x2
jax: 0.10.0
libtpu: 0.0.40
codegen_flags: <defaults>
</compile_context>

<pallas_src>
import jax
import jax.numpy as jnp
import numpy as np
from jax.experimental import pallas as pl
from jax.experimental.pallas import tpu as pltpu


def _vmem_limit_bytes():
    """Scoped-VMEM limit with headroom, derived per TPU generation."""
    try:
        cap = pltpu.get_tpu_info().vmem_capacity_bytes
        return max(16 * 1024 * 1024, min(cap // 2, 64 * 1024 * 1024))
    except Exception:  # unknown chip / interpret mode: conservative default
        return 32 * 1024 * 1024


# ------------------------------------------------ tap-slab builders (XLA side)
def _build_taps(x, nb):
    """x: (B,H,W,Cin) f32 -> (nb, Bb*H*W, 9*Cin) bf16, rows in (b, raster) order."""
    B, H, W, Cin = x.shape
    Bb = B // nb
    xp = jnp.pad(x, ((0, 0), (1, 1), (1, 1), (0, 0)))
    taps = [xp[:, dy:dy + H, dx:dx + W, :].reshape(B, H * W, Cin)
            for dy in range(3) for dx in range(3)]
    t = jnp.concatenate(taps, axis=-1)                        # (B, HW, 9Cin)
    return t.reshape(nb, Bb * H * W, 9 * Cin).astype(jnp.bfloat16)


def _build_pool_taps(x, nb):
    """x: (B,H,W,Cin) f32 -> (nb, 4*Bb*n, 9*Cin) bf16, n = (H//2)*(W//2).

    Channel-concatenated im2col slab with rows grouped by 2x2 maxpool parity:
    within each batch block, group (py,px) holds conv outputs at positions
    (2*oy+py, 2*ox+px) in (b_in_block, raster) order, so the fused pool is an
    element-wise max over the 4 contiguous row groups.
    """
    B, H, W, Cin = x.shape
    Hh, Wh = H // 2, W // 2
    n = Hh * Wh
    Bb = B // nb
    xp = jnp.pad(x, ((0, 0), (1, 1), (1, 1), (0, 0)))
    groups = []
    for py in range(2):
        for px in range(2):
            taps = []
            for dy in range(3):
                for dx in range(3):
                    sl = xp[:, py + dy::2, px + dx::2, :][:, :Hh, :Wh, :]
                    taps.append(sl.reshape(B, n, Cin))
            groups.append(jnp.concatenate(taps, axis=-1))     # (B, n, 9Cin)
    t = jnp.stack(groups, axis=1)                             # (B, 4, n, 9Cin)
    t = t.reshape(nb, Bb, 4, n, 9 * Cin).transpose(0, 2, 1, 3, 4)
    return t.reshape(nb, 4 * Bb * n, 9 * Cin).astype(jnp.bfloat16)


# ------------------------------------------- conv + BN + ReLU + maxpool kernel
def _conv_bn_relu_maxpool_kernel(t_ref, w_ref, s_ref, b_ref, o_ref):
    # t_ref: (4m, 9Cin) bf16 (m = Bb*n, rows grouped by pool parity)
    # w_ref: (9Cin, Cout) bf16   s_ref/b_ref: (1, Cout) f32
    # o_ref: (m, Cout) f32
    m = o_ref.shape[0]
    # One big-K, big-M MXU matmul; fused BN (folded scale/bias) + ReLU in vregs.
    y = jnp.maximum(
        jnp.dot(t_ref[...], w_ref[...], preferred_element_type=jnp.float32)
        * s_ref[...] + b_ref[...], 0.0)
    # Fused 2x2 maxpool: element-wise max over the 4 contiguous row groups.
    p01 = jnp.maximum(y[0 * m:1 * m], y[1 * m:2 * m])
    p23 = jnp.maximum(y[2 * m:3 * m], y[3 * m:4 * m])
    o_ref[...] = jnp.maximum(p01, p23)


def conv_bn_relu_maxpool(x, w9, scale, bias, nb):
    """3x3 conv (stride 1, pad 1) + BN(eval) + ReLU + 2x2/2 maxpool, fused.

    x: (B,H,W,Cin) f32 -> (B,H//2,W//2,Cout) f32.
    """
    B, H, W, Cin = x.shape
    assert H % 2 == 0 and W % 2 == 0, "maxpool2x2 requires even H and W"
    Cout = w9.shape[-1]
    Hh, Wh = H // 2, W // 2
    n = Hh * Wh
    Bb = B // nb
    m = Bb * n
    t = _build_pool_taps(x, nb)                               # (nb, 4m, 9Cin)
    w = w9.reshape(9 * Cin, Cout).astype(jnp.bfloat16)
    out = pl.pallas_call(
        _conv_bn_relu_maxpool_kernel,
        out_shape=jax.ShapeDtypeStruct((nb, m, Cout), jnp.float32),
        grid=(nb,),
        in_specs=[
            pl.BlockSpec((None, 4 * m, 9 * Cin), lambda g: (g, 0, 0)),
            pl.BlockSpec((9 * Cin, Cout), lambda g: (0, 0)),
            pl.BlockSpec((1, Cout), lambda g: (0, 0)),
            pl.BlockSpec((1, Cout), lambda g: (0, 0)),
        ],
        out_specs=pl.BlockSpec((None, m, Cout), lambda g: (g, 0, 0)),
        compiler_params=pltpu.CompilerParams(
            dimension_semantics=("parallel",),
            vmem_limit_bytes=_vmem_limit_bytes()),
    )(t, w, scale.reshape(1, Cout), bias.reshape(1, Cout))
    return out.reshape(B, Hh, Wh, Cout)


# ----------------------- conv4 + BN + ReLU + global avgpool + fc1 + fc2 kernel
def _conv_avgpool_fc_kernel(t_ref, w_ref, s_ref, b_ref,
                            w1_ref, b1_ref, w2_ref, b2_ref, o_ref):
    # t_ref: (Bb*HW, 9Cin) bf16   w_ref: (9Cin, Cout) bf16
    # w1_ref: (Cout, fc_dim) bf16 w2_ref: (fc_dim, out_dim) bf16
    # s/b/b1/b2: f32 row vectors  o_ref: (Bb, out_dim) f32
    bb = o_ref.shape[0]
    hw = t_ref.shape[0] // bb
    y = jnp.maximum(
        jnp.dot(t_ref[...], w_ref[...], preferred_element_type=jnp.float32)
        * s_ref[...] + b_ref[...], 0.0)                       # conv4 + BN + ReLU
    # Global average pool per batch element (static 2D slices, f32).
    rows = [jnp.sum(y[b * hw:(b + 1) * hw], axis=0, keepdims=True)
            for b in range(bb)]
    g = (rows[0] if bb == 1 else jnp.concatenate(rows, axis=0)) * (1.0 / hw)
    # Batched FC matmuls (M = Bb), f32 accumulation.
    h = jnp.maximum(
        jnp.dot(g.astype(jnp.bfloat16), w1_ref[...],
                preferred_element_type=jnp.float32) + b1_ref[...], 0.0)
    o_ref[...] = jnp.dot(h.astype(jnp.bfloat16), w2_ref[...],
                         preferred_element_type=jnp.float32) + b2_ref[...]


def conv_bn_relu_avgpool_fc(x, w9, scale, bias, w1, b1, w2, b2, nb):
    """Fused tail: conv4+BN+ReLU -> AdaptiveAvgPool2d(1) -> fc1+ReLU -> fc2."""
    B, H, W, Cin = x.shape
    Cout = w9.shape[-1]
    fc_dim = w1.shape[-1]
    out_dim = w2.shape[-1]
    HW = H * W
    Bb = B // nb
    t = _build_taps(x, nb)                                    # (nb, Bb*HW, 9Cin)
    w = w9.reshape(9 * Cin, Cout).astype(jnp.bfloat16)
    out = pl.pallas_call(
        _conv_avgpool_fc_kernel,
        out_shape=jax.ShapeDtypeStruct((nb, Bb, out_dim), jnp.float32),
        grid=(nb,),
        in_specs=[
            pl.BlockSpec((None, Bb * HW, 9 * Cin), lambda g: (g, 0, 0)),
            pl.BlockSpec((9 * Cin, Cout), lambda g: (0, 0)),
            pl.BlockSpec((1, Cout), lambda g: (0, 0)),
            pl.BlockSpec((1, Cout), lambda g: (0, 0)),
            pl.BlockSpec((Cout, fc_dim), lambda g: (0, 0)),
            pl.BlockSpec((1, fc_dim), lambda g: (0, 0)),
            pl.BlockSpec((fc_dim, out_dim), lambda g: (0, 0)),
            pl.BlockSpec((1, out_dim), lambda g: (0, 0)),
        ],
        out_specs=pl.BlockSpec((None, Bb, out_dim), lambda g: (g, 0, 0)),
        compiler_params=pltpu.CompilerParams(
            dimension_semantics=("parallel",),
            vmem_limit_bytes=_vmem_limit_bytes()),
    )(t, w, scale.reshape(1, Cout), bias.reshape(1, Cout),
      w1.astype(jnp.bfloat16), b1.reshape(1, fc_dim),
      w2.astype(jnp.bfloat16), b2.reshape(1, out_dim))
    return out.reshape(B, out_dim)


# -------------------------------------------------------------- params & model
def init_params(key, in_channels, num_fiducial, model_name):
    if model_name == 'large':
        filters, fc_dim = [64, 128, 256, 512], 256
    else:
        filters, fc_dim = [16, 32, 64, 128], 64
    eps = 1e-5
    params = {'convs': []}
    cin = in_channels
    for cout in filters:
        key, k1, k2, k3, k4, k5, k6 = jax.random.split(key, 7)
        w = jax.random.normal(k1, (9, cin, cout), jnp.float32) / jnp.sqrt(9.0 * cin)
        conv_b = 0.1 * jax.random.normal(k2, (cout,), jnp.float32)
        gamma = 1.0 + 0.1 * jax.random.normal(k3, (cout,), jnp.float32)
        beta = 0.1 * jax.random.normal(k4, (cout,), jnp.float32)
        mean = 0.1 * jax.random.normal(k5, (cout,), jnp.float32)
        var = jax.random.uniform(k6, (cout,), jnp.float32, 0.5, 1.5)
        scale = gamma / jnp.sqrt(var + eps)
        bias = (conv_b - mean) * scale + beta
        params['convs'].append({'w': w, 'scale': scale, 'bias': bias})
        cin = cout
    key, k1, k2, k3, k4 = jax.random.split(key, 5)
    params['fc1_w'] = jax.random.normal(k1, (cin, fc_dim), jnp.float32) / jnp.sqrt(cin)
    params['fc1_b'] = 0.1 * jax.random.normal(k2, (fc_dim,), jnp.float32)
    params['fc2_w'] = jax.random.normal(k3, (fc_dim, num_fiducial * 2),
                                        jnp.float32) / jnp.sqrt(fc_dim)
    params['fc2_b'] = 0.1 * jax.random.normal(k4, (num_fiducial * 2,), jnp.float32)
    return params


def localization_network(params, x_nchw, num_fiducial):
    x = jnp.transpose(x_nchw, (0, 2, 3, 1))                   # NCHW -> NHWC
    B = x.shape[0]
    # 2-way batch split: shards the "parallel" grid axis across v7x's two
    # TensorCores; costs one extra tiny sequential grid step on v5e/v6e.
    nb = 2 if (B % 2 == 0 and B >= 2) else 1
    for c in params['convs'][:3]:
        x = conv_bn_relu_maxpool(x, c['w'], c['scale'], c['bias'], nb)
    c = params['convs'][3]
    o = conv_bn_relu_avgpool_fc(x, c['w'], c['scale'], c['bias'],
                                params['fc1_w'], params['fc1_b'],
                                params['fc2_w'], params['fc2_b'], nb)
    return o.reshape(B, num_fiducial, 2)


# --------------------------------------------------------- pure-JAX reference
# Same bf16-input / f32-accumulation precision policy as the kernels, so the
# comparison validates the kernel structure at tight tolerance.
def reference(params, x_nchw, num_fiducial):
    x = jnp.transpose(x_nchw, (0, 2, 3, 1))
    for i, c in enumerate(params['convs']):
        cin, cout = c['w'].shape[1], c['w'].shape[2]
        w_hwio = c['w'].reshape(3, 3, cin, cout).astype(jnp.bfloat16)
        y = jax.lax.conv_general_dilated(
            x.astype(jnp.bfloat16), w_hwio, window_strides=(1, 1), padding='SAME',
            dimension_numbers=('NHWC', 'HWIO', 'NHWC'),
            preferred_element_type=jnp.float32)
        y = jnp.maximum(y * c['scale'] + c['bias'], 0.0)
        if i < 3:
            B, H, W, C = y.shape
            x = y.reshape(B, H // 2, 2, W // 2, 2, C).max(axis=(2, 4))
        else:
            x = y.mean(axis=(1, 2))
    h = jnp.dot(x.astype(jnp.bfloat16), params['fc1_w'].astype(jnp.bfloat16),
                preferred_element_type=jnp.float32) + params['fc1_b']
    h = jnp.maximum(h, 0.0)
    o = jnp.dot(h.astype(jnp.bfloat16), params['fc2_w'].astype(jnp.bfloat16),
                preferred_element_type=jnp.float32) + params['fc2_b']
    return o.reshape(-1, num_fiducial, 2)


if __name__ == "__main__":
    B, C, H, W = 2, 4, 16, 16
    num_fiducial = 20
    key = jax.random.PRNGKey(0)
    key, kx = jax.random.split(key)
    x = jax.random.normal(kx, (B, C, H, W), jnp.float32)
    params = init_params(key, C, num_fiducial, 'small')

    fwd = jax.jit(localization_network, static_argnums=2)
    out = jax.block_until_ready(fwd(params, x, num_fiducial))
    assert out.shape == (B, num_fiducial, 2)

    ref = jax.block_until_ready(reference(params, x, num_fiducial))
    np.testing.assert_allclose(np.asarray(out), np.asarray(ref),
                               rtol=2e-3, atol=2e-3)
    print("KERNEL_OK")
</pallas_src>

<mosaic_0001>
module attributes {stable_mosaic.version = 11 : i64} {
  func.func @_conv_bn_relu_maxpool_kernel(%arg0: i32, %arg1: memref<1x256x36xbf16, #tpu.memory_space<vmem>>, %arg2: memref<36x16xbf16, #tpu.memory_space<vmem>>, %arg3: memref<1x16xf32, #tpu.memory_space<vmem>>, %arg4: memref<1x16xf32, #tpu.memory_space<vmem>>, %arg5: memref<1x64x16xf32, #tpu.memory_space<vmem>>) attributes {dimension_semantics = [#tpu.dimension_semantics<parallel>], iteration_bounds = array<i64: 2>, scalar_prefetch = 0 : i64, scratch_operands = 0 : i64, tpu.core_type = #tpu.core_type<tc>, window_params = [{transform_indices = @transform_0, window_bounds = array<i64: 1, 256, 36>}, {pipeline_mode = #tpu.pipeline_mode<synchronous>, transform_indices = @transform_1, window_bounds = array<i64: 36, 16>}, {pipeline_mode = #tpu.pipeline_mode<synchronous>, transform_indices = @transform_2, window_bounds = array<i64: 1, 16>}, {pipeline_mode = #tpu.pipeline_mode<synchronous>, transform_indices = @transform_3, window_bounds = array<i64: 1, 16>}, {transform_indices = @transform_4, window_bounds = array<i64: 1, 64, 16>}]} {
    %c0 = arith.constant 0 : index
    %c0_0 = arith.constant 0 : index
    %c0_1 = arith.constant 0 : index
    %0 = vector.load %arg1[%c0, %c0_0, %c0_1] : memref<1x256x36xbf16, #tpu.memory_space<vmem>>, vector<1x256x36xbf16>
    %1 = vector.shape_cast %0 : vector<1x256x36xbf16> to vector<256x36xbf16>
    %c0_2 = arith.constant 0 : index
    %c0_3 = arith.constant 0 : index
    %2 = vector.load %arg2[%c0_2, %c0_3] : memref<36x16xbf16, #tpu.memory_space<vmem>>, vector<36x16xbf16>
    %cst = arith.constant dense<0.000000e+00> : vector<256x16xf32>
    %3 = tpu.matmul %1, %2, %cst {dimension_numbers = #tpu.dot_dimension_numbers<[1], [0], [0], [1], [0, 0, 1, 1], [], []>} : vector<256x36xbf16>, vector<36x16xbf16>, vector<256x16xf32> -> vector<256x16xf32>
    %c0_4 = arith.constant 0 : index
    %c0_5 = arith.constant 0 : index
    %4 = vector.load %arg3[%c0_4, %c0_5] : memref<1x16xf32, #tpu.memory_space<vmem>>, vector<1x16xf32>
    %5 = vector.broadcast %4 : vector<1x16xf32> to vector<256x16xf32>
    %6 = arith.mulf %3, %5 : vector<256x16xf32>
    %c0_6 = arith.constant 0 : index
    %c0_7 = arith.constant 0 : index
    %7 = vector.load %arg4[%c0_6, %c0_7] : memref<1x16xf32, #tpu.memory_space<vmem>>, vector<1x16xf32>
    %8 = vector.broadcast %7 : vector<1x16xf32> to vector<256x16xf32>
    %9 = arith.addf %6, %8 : vector<256x16xf32>
    %cst_8 = arith.constant 0.000000e+00 : f32
    %10 = vector.broadcast %cst_8 : f32 to vector<256x16xf32>
    %11 = arith.maximumf %9, %10 : vector<256x16xf32>
    %12 = vector.extract_strided_slice %11 {offsets = [0, 0], sizes = [64, 16], strides = [1, 1]} : vector<256x16xf32> to vector<64x16xf32>
    %13 = vector.extract_strided_slice %11 {offsets = [64, 0], sizes = [64, 16], strides = [1, 1]} : vector<256x16xf32> to vector<64x16xf32>
    %14 = arith.maximumf %12, %13 : vector<64x16xf32>
    %15 = vector.extract_strided_slice %11 {offsets = [128, 0], sizes = [64, 16], strides = [1, 1]} : vector<256x16xf32> to vector<64x16xf32>
    %16 = vector.extract_strided_slice %11 {offsets = [192, 0], sizes = [64, 16], strides = [1, 1]} : vector<256x16xf32> to vector<64x16xf32>
    %17 = arith.maximumf %15, %16 : vector<64x16xf32>
    %18 = arith.maximumf %14, %17 : vector<64x16xf32>
    %c0_9 = arith.constant 0 : index
    %c0_10 = arith.constant 0 : index
    %c0_11 = arith.constant 0 : index
    %19 = vector.load %arg5[%c0_9, %c0_10, %c0_11] : memref<1x64x16xf32, #tpu.memory_space<vmem>>, vector<1x64x16xf32>
    %20 = vector.shape_cast %19 : vector<1x64x16xf32> to vector<64x16xf32>
    %21 = vector.shape_cast %18 : vector<64x16xf32> to vector<1x64x16xf32>
    tpu.vector_store %arg5[%c0_9, %c0_10, %c0_11], %21 {strides = array<i32>} : memref<1x64x16xf32, #tpu.memory_space<vmem>>, vector<1x64x16xf32>,
    return
  }
  func.func @transform_0(%arg0: i32) -> (i32, i32, i32) {
    %c0_i32 = arith.constant 0 : i32
    %c0_i32_0 = arith.constant 0 : i32
    %c0_i32_1 = arith.constant 0 : i32
    return %arg0, %c0_i32, %c0_i32_0 : i32, i32, i32
  }
  func.func @transform_1(%arg0: i32) -> (i32, i32) {
    %c0_i32 = arith.constant 0 : i32
    %c0_i32_0 = arith.constant 0 : i32
    %c0_i32_1 = arith.constant 0 : i32
    return %c0_i32, %c0_i32_0 : i32, i32
  }
  func.func @transform_2(%arg0: i32) -> (i32, i32) {
    %c0_i32 = arith.constant 0 : i32
    %c0_i32_0 = arith.constant 0 : i32
    %c0_i32_1 = arith.constant 0 : i32
    return %c0_i32, %c0_i32_0 : i32, i32
  }
  func.func @transform_3(%arg0: i32) -> (i32, i32) {
    %c0_i32 = arith.constant 0 : i32
    %c0_i32_0 = arith.constant 0 : i32
    %c0_i32_1 = arith.constant 0 : i32
    return %c0_i32, %c0_i32_0 : i32, i32
  }
  func.func @transform_4(%arg0: i32) -> (i32, i32, i32) {
    %c0_i32 = arith.constant 0 : i32
    %c0_i32_0 = arith.constant 0 : i32
    %c0_i32_1 = arith.constant 0 : i32
    return %arg0, %c0_i32, %c0_i32_0 : i32, i32, i32
  }
}

module attributes {stable_mosaic.version = 11 : i64} {
  func.func @_conv_bn_relu_maxpool_kernel(%arg0: i32, %arg1: memref<1x64x144xbf16, #tpu.memory_space<vmem>>, %arg2: memref<144x32xbf16, #tpu.memory_space<vmem>>, %arg3: memref<1x32xf32, #tpu.memory_space<vmem>>, %arg4: memref<1x32xf32, #tpu.memory_space<vmem>>, %arg5: memref<1x16x32xf32, #tpu.memory_space<vmem>>) attributes {dimension_semantics = [#tpu.dimension_semantics<parallel>], iteration_bounds = array<i64: 2>, scalar_prefetch = 0 : i64, scratch_operands = 0 : i64, tpu.core_type = #tpu.core_type<tc>, window_params = [{transform_indices = @transform_0, window_bounds = array<i64: 1, 64, 144>}, {pipeline_mode = #tpu.pipeline_mode<synchronous>, transform_indices = @transform_1, window_bounds = array<i64: 144, 32>}, {pipeline_mode = #tpu.pipeline_mode<synchronous>, transform_indices = @transform_2, window_bounds = array<i64: 1, 32>}, {pipeline_mode = #tpu.pipeline_mode<synchronous>, transform_indices = @transform_3, window_bounds = array<i64: 1, 32>}, {transform_indices = @transform_4, window_bounds = array<i64: 1, 16, 32>}]} {
    %c0 = arith.constant 0 : index
    %c0_0 = arith.constant 0 : index
    %c0_1 = arith.constant 0 : index
    %0 = vector.load %arg1[%c0, %c0_0, %c0_1] : memref<1x64x144xbf16, #tpu.memory_space<vmem>>, vector<1x64x144xbf16>
    %1 = vector.shape_cast %0 : vector<1x64x144xbf16> to vector<64x144xbf16>
    %c0_2 = arith.constant 0 : index
    %c0_3 = arith.constant 0 : index
    %2 = vector.load %arg2[%c0_2, %c0_3] : memref<144x32xbf16, #tpu.memory_space<vmem>>, vector<144x32xbf16>
    %cst = arith.constant dense<0.000000e+00> : vector<64x32xf32>
    %3 = tpu.matmul %1, %2, %cst {dimension_numbers = #tpu.dot_dimension_numbers<[1], [0], [0], [1], [0, 0, 1, 1], [], []>} : vector<64x144xbf16>, vector<144x32xbf16>, vector<64x32xf32> -> vector<64x32xf32>
    %c0_4 = arith.constant 0 : index
    %c0_5 = arith.constant 0 : index
    %4 = vector.load %arg3[%c0_4, %c0_5] : memref<1x32xf32, #tpu.memory_space<vmem>>, vector<1x32xf32>
    %5 = vector.broadcast %4 : vector<1x32xf32> to vector<64x32xf32>
    %6 = arith.mulf %3, %5 : vector<64x32xf32>
    %c0_6 = arith.constant 0 : index
    %c0_7 = arith.constant 0 : index
    %7 = vector.load %arg4[%c0_6, %c0_7] : memref<1x32xf32, #tpu.memory_space<vmem>>, vector<1x32xf32>
    %8 = vector.broadcast %7 : vector<1x32xf32> to vector<64x32xf32>
    %9 = arith.addf %6, %8 : vector<64x32xf32>
    %cst_8 = arith.constant 0.000000e+00 : f32
    %10 = vector.broadcast %cst_8 : f32 to vector<64x32xf32>
    %11 = arith.maximumf %9, %10 : vector<64x32xf32>
    %12 = vector.extract_strided_slice %11 {offsets = [0, 0], sizes = [16, 32], strides = [1, 1]} : vector<64x32xf32> to vector<16x32xf32>
    %13 = vector.extract_strided_slice %11 {offsets = [16, 0], sizes = [16, 32], strides = [1, 1]} : vector<64x32xf32> to vector<16x32xf32>
    %14 = arith.maximumf %12, %13 : vector<16x32xf32>
    %15 = vector.extract_strided_slice %11 {offsets = [32, 0], sizes = [16, 32], strides = [1, 1]} : vector<64x32xf32> to vector<16x32xf32>
    %16 = vector.extract_strided_slice %11 {offsets = [48, 0], sizes = [16, 32], strides = [1, 1]} : vector<64x32xf32> to vector<16x32xf32>
    %17 = arith.maximumf %15, %16 : vector<16x32xf32>
    %18 = arith.maximumf %14, %17 : vector<16x32xf32>
    %c0_9 = arith.constant 0 : index
    %c0_10 = arith.constant 0 : index
    %c0_11 = arith.constant 0 : index
    %19 = vector.load %arg5[%c0_9, %c0_10, %c0_11] : memref<1x16x32xf32, #tpu.memory_space<vmem>>, vector<1x16x32xf32>
    %20 = vector.shape_cast %19 : vector<1x16x32xf32> to vector<16x32xf32>
    %21 = vector.shape_cast %18 : vector<16x32xf32> to vector<1x16x32xf32>
    tpu.vector_store %arg5[%c0_9, %c0_10, %c0_11], %21 {strides = array<i32>} : memref<1x16x32xf32, #tpu.memory_space<vmem>>, vector<1x16x32xf32>,
    return
  }
  func.func @transform_0(%arg0: i32) -> (i32, i32, i32) {
    %c0_i32 = arith.constant 0 : i32
    %c0_i32_0 = arith.constant 0 : i32
    %c0_i32_1 = arith.constant 0 : i32
    return %arg0, %c0_i32, %c0_i32_0 : i32, i32, i32
  }
  func.func @transform_1(%arg0: i32) -> (i32, i32) {
    %c0_i32 = arith.constant 0 : i32
    %c0_i32_0 = arith.constant 0 : i32
    %c0_i32_1 = arith.constant 0 : i32
    return %c0_i32, %c0_i32_0 : i32, i32
  }
  func.func @transform_2(%arg0: i32) -> (i32, i32) {
    %c0_i32 = arith.constant 0 : i32
    %c0_i32_0 = arith.constant 0 : i32
    %c0_i32_1 = arith.constant 0 : i32
    return %c0_i32, %c0_i32_0 : i32, i32
  }
  func.func @transform_3(%arg0: i32) -> (i32, i32) {
    %c0_i32 = arith.constant 0 : i32
    %c0_i32_0 = arith.constant 0 : i32
    %c0_i32_1 = arith.constant 0 : i32
    return %c0_i32, %c0_i32_0 : i32, i32
  }
  func.func @transform_4(%arg0: i32) -> (i32, i32, i32) {
    %c0_i32 = arith.constant 0 : i32
    %c0_i32_0 = arith.constant 0 : i32
    %c0_i32_1 = arith.constant 0 : i32
    return %arg0, %c0_i32, %c0_i32_0 : i32, i32, i32
  }
}

module attributes {stable_mosaic.version = 11 : i64} {
  func.func @_conv_bn_relu_maxpool_kernel(%arg0: i32, %arg1: memref<1x16x288xbf16, #tpu.memory_space<vmem>>, %arg2: memref<288x64xbf16, #tpu.memory_space<vmem>>, %arg3: memref<1x64xf32, #tpu.memory_space<vmem>>, %arg4: memref<1x64xf32, #tpu.memory_space<vmem>>, %arg5: memref<1x4x64xf32, #tpu.memory_space<vmem>>) attributes {dimension_semantics = [#tpu.dimension_semantics<parallel>], iteration_bounds = array<i64: 2>, scalar_prefetch = 0 : i64, scratch_operands = 0 : i64, tpu.core_type = #tpu.core_type<tc>, window_params = [{transform_indices = @transform_0, window_bounds = array<i64: 1, 16, 288>}, {pipeline_mode = #tpu.pipeline_mode<synchronous>, transform_indices = @transform_1, window_bounds = array<i64: 288, 64>}, {pipeline_mode = #tpu.pipeline_mode<synchronous>, transform_indices = @transform_2, window_bounds = array<i64: 1, 64>}, {pipeline_mode = #tpu.pipeline_mode<synchronous>, transform_indices = @transform_3, window_bounds = array<i64: 1, 64>}, {transform_indices = @transform_4, window_bounds = array<i64: 1, 4, 64>}]} {
    %c0 = arith.constant 0 : index
    %c0_0 = arith.constant 0 : index
    %c0_1 = arith.constant 0 : index
    %0 = vector.load %arg1[%c0, %c0_0, %c0_1] : memref<1x16x288xbf16, #tpu.memory_space<vmem>>, vector<1x16x288xbf16>
    %1 = vector.shape_cast %0 : vector<1x16x288xbf16> to vector<16x288xbf16>
    %c0_2 = arith.constant 0 : index
    %c0_3 = arith.constant 0 : index
    %2 = vector.load %arg2[%c0_2, %c0_3] : memref<288x64xbf16, #tpu.memory_space<vmem>>, vector<288x64xbf16>
    %cst = arith.constant dense<0.000000e+00> : vector<16x64xf32>
    %3 = tpu.matmul %1, %2, %cst {dimension_numbers = #tpu.dot_dimension_numbers<[1], [0], [0], [1], [0, 0, 1, 1], [], []>} : vector<16x288xbf16>, vector<288x64xbf16>, vector<16x64xf32> -> vector<16x64xf32>
    %c0_4 = arith.constant 0 : index
    %c0_5 = arith.constant 0 : index
    %4 = vector.load %arg3[%c0_4, %c0_5] : memref<1x64xf32, #tpu.memory_space<vmem>>, vector<1x64xf32>
    %5 = vector.broadcast %4 : vector<1x64xf32> to vector<16x64xf32>
    %6 = arith.mulf %3, %5 : vector<16x64xf32>
    %c0_6 = arith.constant 0 : index
    %c0_7 = arith.constant 0 : index
    %7 = vector.load %arg4[%c0_6, %c0_7] : memref<1x64xf32, #tpu.memory_space<vmem>>, vector<1x64xf32>
    %8 = vector.broadcast %7 : vector<1x64xf32> to vector<16x64xf32>
    %9 = arith.addf %6, %8 : vector<16x64xf32>
    %cst_8 = arith.constant 0.000000e+00 : f32
    %10 = vector.broadcast %cst_8 : f32 to vector<16x64xf32>
    %11 = arith.maximumf %9, %10 : vector<16x64xf32>
    %12 = vector.extract_strided_slice %11 {offsets = [0, 0], sizes = [4, 64], strides = [1, 1]} : vector<16x64xf32> to vector<4x64xf32>
    %13 = vector.extract_strided_slice %11 {offsets = [4, 0], sizes = [4, 64], strides = [1, 1]} : vector<16x64xf32> to vector<4x64xf32>
    %14 = arith.maximumf %12, %13 : vector<4x64xf32>
    %15 = vector.extract_strided_slice %11 {offsets = [8, 0], sizes = [4, 64], strides = [1, 1]} : vector<16x64xf32> to vector<4x64xf32>
    %16 = vector.extract_strided_slice %11 {offsets = [12, 0], sizes = [4, 64], strides = [1, 1]} : vector<16x64xf32> to vector<4x64xf32>
    %17 = arith.maximumf %15, %16 : vector<4x64xf32>
    %18 = arith.maximumf %14, %17 : vector<4x64xf32>
    %c0_9 = arith.constant 0 : index
    %c0_10 = arith.constant 0 : index
    %c0_11 = arith.constant 0 : index
    %19 = vector.load %arg5[%c0_9, %c0_10, %c0_11] : memref<1x4x64xf32, #tpu.memory_space<vmem>>, vector<1x4x64xf32>
    %20 = vector.shape_cast %19 : vector<1x4x64xf32> to vector<4x64xf32>
    %21 = vector.shape_cast %18 : vector<4x64xf32> to vector<1x4x64xf32>
    tpu.vector_store %arg5[%c0_9, %c0_10, %c0_11], %21 {strides = array<i32>} : memref<1x4x64xf32, #tpu.memory_space<vmem>>, vector<1x4x64xf32>,
    return
  }
  func.func @transform_0(%arg0: i32) -> (i32, i32, i32) {
    %c0_i32 = arith.constant 0 : i32
    %c0_i32_0 = arith.constant 0 : i32
    %c0_i32_1 = arith.constant 0 : i32
    return %arg0, %c0_i32, %c0_i32_0 : i32, i32, i32
  }
  func.func @transform_1(%arg0: i32) -> (i32, i32) {
    %c0_i32 = arith.constant 0 : i32
    %c0_i32_0 = arith.constant 0 : i32
    %c0_i32_1 = arith.constant 0 : i32
    return %c0_i32, %c0_i32_0 : i32, i32
  }
  func.func @transform_2(%arg0: i32) -> (i32, i32) {
    %c0_i32 = arith.constant 0 : i32
    %c0_i32_0 = arith.constant 0 : i32
    %c0_i32_1 = arith.constant 0 : i32
    return %c0_i32, %c0_i32_0 : i32, i32
  }
  func.func @transform_3(%arg0: i32) -> (i32, i32) {
    %c0_i32 = arith.constant 0 : i32
    %c0_i32_0 = arith.constant 0 : i32
    %c0_i32_1 = arith.constant 0 : i32
    return %c0_i32, %c0_i32_0 : i32, i32
  }
  func.func @transform_4(%arg0: i32) -> (i32, i32, i32) {
    %c0_i32 = arith.constant 0 : i32
    %c0_i32_0 = arith.constant 0 : i32
    %c0_i32_1 = arith.constant 0 : i32
    return %arg0, %c0_i32, %c0_i32_0 : i32, i32, i32
  }
}

module attributes {stable_mosaic.version = 11 : i64} {
  func.func @_conv_avgpool_fc_kernel(%arg0: i32, %arg1: memref<1x4x576xbf16, #tpu.memory_space<vmem>>, %arg2: memref<576x128xbf16, #tpu.memory_space<vmem>>, %arg3: memref<1x128xf32, #tpu.memory_space<vmem>>, %arg4: memref<1x128xf32, #tpu.memory_space<vmem>>, %arg5: memref<128x64xbf16, #tpu.memory_space<vmem>>, %arg6: memref<1x64xf32, #tpu.memory_space<vmem>>, %arg7: memref<64x40xbf16, #tpu.memory_space<vmem>>, %arg8: memref<1x40xf32, #tpu.memory_space<vmem>>, %arg9: memref<1x1x40xf32, #tpu.memory_space<vmem>>) attributes {dimension_semantics = [#tpu.dimension_semantics<parallel>], iteration_bounds = array<i64: 2>, scalar_prefetch = 0 : i64, scratch_operands = 0 : i64, tpu.core_type = #tpu.core_type<tc>, window_params = [{transform_indices = @transform_0, window_bounds = array<i64: 1, 4, 576>}, {pipeline_mode = #tpu.pipeline_mode<synchronous>, transform_indices = @transform_1, window_bounds = array<i64: 576, 128>}, {pipeline_mode = #tpu.pipeline_mode<synchronous>, transform_indices = @transform_2, window_bounds = array<i64: 1, 128>}, {pipeline_mode = #tpu.pipeline_mode<synchronous>, transform_indices = @transform_3, window_bounds = array<i64: 1, 128>}, {pipeline_mode = #tpu.pipeline_mode<synchronous>, transform_indices = @transform_4, window_bounds = array<i64: 128, 64>}, {pipeline_mode = #tpu.pipeline_mode<synchronous>, transform_indices = @transform_5, window_bounds = array<i64: 1, 64>}, {pipeline_mode = #tpu.pipeline_mode<synchronous>, transform_indices = @transform_6, window_bounds = array<i64: 64, 40>}, {pipeline_mode = #tpu.pipeline_mode<synchronous>, transform_indices = @transform_7, window_bounds = array<i64: 1, 40>}, {transform_indices = @transform_8, window_bounds = array<i64: 1, 1, 40>}]} {
    %c0 = arith.constant 0 : index
    %c0_0 = arith.constant 0 : index
    %c0_1 = arith.constant 0 : index
    %0 = vector.load %arg1[%c0, %c0_0, %c0_1] : memref<1x4x576xbf16, #tpu.memory_space<vmem>>, vector<1x4x576xbf16>
    %1 = vector.shape_cast %0 : vector<1x4x576xbf16> to vector<4x576xbf16>
    %c0_2 = arith.constant 0 : index
    %c0_3 = arith.constant 0 : index
    %2 = vector.load %arg2[%c0_2, %c0_3] : memref<576x128xbf16, #tpu.memory_space<vmem>>, vector<576x128xbf16>
    %cst = arith.constant dense<0.000000e+00> : vector<4x128xf32>
    %3 = tpu.matmul %1, %2, %cst {dimension_numbers = #tpu.dot_dimension_numbers<[1], [0], [0], [1], [0, 0, 1, 1], [], []>} : vector<4x576xbf16>, vector<576x128xbf16>, vector<4x128xf32> -> vector<4x128xf32>
    %c0_4 = arith.constant 0 : index
    %c0_5 = arith.constant 0 : index
    %4 = vector.load %arg3[%c0_4, %c0_5] : memref<1x128xf32, #tpu.memory_space<vmem>>, vector<1x128xf32>
    %5 = vector.broadcast %4 : vector<1x128xf32> to vector<4x128xf32>
    %6 = arith.mulf %3, %5 : vector<4x128xf32>
    %c0_6 = arith.constant 0 : index
    %c0_7 = arith.constant 0 : index
    %7 = vector.load %arg4[%c0_6, %c0_7] : memref<1x128xf32, #tpu.memory_space<vmem>>, vector<1x128xf32>
    %8 = vector.broadcast %7 : vector<1x128xf32> to vector<4x128xf32>
    %9 = arith.addf %6, %8 : vector<4x128xf32>
    %cst_8 = arith.constant 0.000000e+00 : f32
    %10 = vector.broadcast %cst_8 : f32 to vector<4x128xf32>
    %11 = arith.maximumf %9, %10 : vector<4x128xf32>
    %cst_9 = arith.constant dense<0.000000e+00> : vector<128xf32>
    %12 = vector.multi_reduction <add>, %11, %cst_9 [0] : vector<4x128xf32> to vector<128xf32>
    %13 = vector.shape_cast %12 : vector<128xf32> to vector<1x128xf32>
    %cst_10 = arith.constant 2.500000e-01 : f32
    %14 = vector.broadcast %cst_10 : f32 to vector<1x128xf32>
    %15 = arith.mulf %13, %14 : vector<1x128xf32>
    %16 = arith.truncf %15 : vector<1x128xf32> to vector<1x128xbf16>
    %c0_11 = arith.constant 0 : index
    %c0_12 = arith.constant 0 : index
    %17 = vector.load %arg5[%c0_11, %c0_12] : memref<128x64xbf16, #tpu.memory_space<vmem>>, vector<128x64xbf16>
    %cst_13 = arith.constant dense<0.000000e+00> : vector<1x64xf32>
    %18 = tpu.matmul %16, %17, %cst_13 {dimension_numbers = #tpu.dot_dimension_numbers<[1], [0], [0], [1], [0, 0, 1, 1], [], []>} : vector<1x128xbf16>, vector<128x64xbf16>, vector<1x64xf32> -> vector<1x64xf32>
    %c0_14 = arith.constant 0 : index
    %c0_15 = arith.constant 0 : index
    %19 = vector.load %arg6[%c0_14, %c0_15] : memref<1x64xf32, #tpu.memory_space<vmem>>, vector<1x64xf32>
    %20 = arith.addf %18, %19 : vector<1x64xf32>
    %cst_16 = arith.constant 0.000000e+00 : f32
    %21 = vector.broadcast %cst_16 : f32 to vector<1x64xf32>
    %22 = arith.maximumf %20, %21 : vector<1x64xf32>
    %23 = arith.truncf %22 : vector<1x64xf32> to vector<1x64xbf16>
    %c0_17 = arith.constant 0 : index
    %c0_18 = arith.constant 0 : index
    %24 = vector.load %arg7[%c0_17, %c0_18] : memref<64x40xbf16, #tpu.memory_space<vmem>>, vector<64x40xbf16>
    %cst_19 = arith.constant dense<0.000000e+00> : vector<1x40xf32>
    %25 = tpu.matmul %23, %24, %cst_19 {dimension_numbers = #tpu.dot_dimension_numbers<[1], [0], [0], [1], [0, 0, 1, 1], [], []>} : vector<1x64xbf16>, vector<64x40xbf16>, vector<1x40xf32> -> vector<1x40xf32>
    %c0_20 = arith.constant 0 : index
    %c0_21 = arith.constant 0 : index
    %26 = vector.load %arg8[%c0_20, %c0_21] : memref<1x40xf32, #tpu.memory_space<vmem>>, vector<1x40xf32>
    %27 = arith.addf %25, %26 : vector<1x40xf32>
    %c0_22 = arith.constant 0 : index
    %c0_23 = arith.constant 0 : index
    %c0_24 = arith.constant 0 : index
    %28 = vector.load %arg9[%c0_22, %c0_23, %c0_24] : memref<1x1x40xf32, #tpu.memory_space<vmem>>, vector<1x1x40xf32>
    %29 = vector.shape_cast %28 : vector<1x1x40xf32> to vector<1x40xf32>
    %30 = vector.shape_cast %27 : vector<1x40xf32> to vector<1x1x40xf32>
    tpu.vector_store %arg9[%c0_22, %c0_23, %c0_24], %30 {strides = array<i32>} : memref<1x1x40xf32, #tpu.memory_space<vmem>>, vector<1x1x40xf32>,
    return
  }
  func.func @transform_0(%arg0: i32) -> (i32, i32, i32) {
    %c0_i32 = arith.constant 0 : i32
    %c0_i32_0 = arith.constant 0 : i32
    %c0_i32_1 = arith.constant 0 : i32
    return %arg0, %c0_i32, %c0_i32_0 : i32, i32, i32
  }
  func.func @transform_1(%arg0: i32) -> (i32, i32) {
    %c0_i32 = arith.constant 0 : i32
    %c0_i32_0 = arith.constant 0 : i32
    %c0_i32_1 = arith.constant 0 : i32
    return %c0_i32, %c0_i32_0 : i32, i32
  }
  func.func @transform_2(%arg0: i32) -> (i32, i32) {
    %c0_i32 = arith.constant 0 : i32
    %c0_i32_0 = arith.constant 0 : i32
    %c0_i32_1 = arith.constant 0 : i32
    return %c0_i32, %c0_i32_0 : i32, i32
  }
  func.func @transform_3(%arg0: i32) -> (i32, i32) {
    %c0_i32 = arith.constant 0 : i32
    %c0_i32_0 = arith.constant 0 : i32
    %c0_i32_1 = arith.constant 0 : i32
    return %c0_i32, %c0_i32_0 : i32, i32
  }
  func.func @transform_4(%arg0: i32) -> (i32, i32) {
    %c0_i32 = arith.constant 0 : i32
    %c0_i32_0 = arith.constant 0 : i32
    %c0_i32_1 = arith.constant 0 : i32
    return %c0_i32, %c0_i32_0 : i32, i32
  }
  func.func @transform_5(%arg0: i32) -> (i32, i32) {
    %c0_i32 = arith.constant 0 : i32
    %c0_i32_0 = arith.constant 0 : i32
    %c0_i32_1 = arith.constant 0 : i32
    return %c0_i32, %c0_i32_0 : i32, i32
  }
  func.func @transform_6(%arg0: i32) -> (i32, i32) {
    %c0_i32 = arith.constant 0 : i32
    %c0_i32_0 = arith.constant 0 : i32
    %c0_i32_1 = arith.constant 0 : i32
    return %c0_i32, %c0_i32_0 : i32, i32
  }
  func.func @transform_7(%arg0: i32) -> (i32, i32) {
    %c0_i32 = arith.constant 0 : i32
    %c0_i32_0 = arith.constant 0 : i32
    %c0_i32_1 = arith.constant 0 : i32
    return %c0_i32, %c0_i32_0 : i32, i32
  }
  func.func @transform_8(%arg0: i32) -> (i32, i32, i32) {
    %c0_i32 = arith.constant 0 : i32
    %c0_i32_0 = arith.constant 0 : i32
    %c0_i32_1 = arith.constant 0 : i32
    return %arg0, %c0_i32, %c0_i32_0 : i32, i32, i32
  }
}

</mosaic_0001>

<llo_original>
// kernel: localization_network.4
$region0: #{localization_network.4}
  #allocation0 [shape = 'u32[]', space=smem, size = 0x4, offset = 0x4, fixed_abs, tag = 'smem constant byte address 0x4 - core index']
  #allocation1 [shape = 'u32[72,128]{1,0:T(1,128)}', space=vmem, size = 0x9000, scoped, tag = 'internal scratch']
  %s0 = inlined_call_operand.vmem [shape: bf16[2,256,36], index: 0, kind: input, shape index: {}]
  %s1 = inlined_call_operand.vmem [shape: bf16[36,16], index: 1, kind: input, shape index: {}]
  %s2 = inlined_call_operand.vmem [shape: f32[1,16], index: 2, kind: input, shape index: {}]
  %s3 = inlined_call_operand.vmem [shape: f32[1,16], index: 3, kind: input, shape index: {}]
  %s4 = inlined_call_operand.vmem [shape: f32[2,64,16], index: 4, kind: output, shape index: {}]
  %s5 = sld [smem:[#allocation0]]
  $region49: #{localization_network.4} parent=0
    _
  %s7 = ssub.s32 1, %s5
  %s8 = scalar_select 0, %s7, %s5
  loop: start=0, step=1, limit=4
  $region2: #{localization_network.4} parent=0 // loop_pre_header
    _
  $region3: #{localization_network.4} parent=0 // loop_header
    %s10 = sphi 0, %s14
    %p11 = scmp.ge.s32.totalorder %s10, 4
    %s20 = sphi 0, %s22
    %s23 = sphi 0, %s20
    %s24 = sphi 0, %s23
    %s40 = sphi 0, %s24
    %s44 = sphi 0, %s44
    %s46 = sphi 0, %s44
    %s47 = sphi 0, %s46
    %s61 = sphi 0, %s47
    %s65 = sphi 0, %s65
    %s67 = sphi 0, %s65
    %s68 = sphi 0, %s67
    %s82 = sphi 0, %s68
    %s86 = sphi 0, %s86
    %s88 = sphi 0, %s86
    %s89 = sphi 0, %s88
    %s103 = sphi 0, %s89
    %s109 = sphi 0, %s111
    %s112 = sphi 0, %s109
    %s113 = sphi 0, %s112
    %s129 = sphi 0, %s113
  $region4: #{localization_network.4} parent=0 // loop_header_branch
    %13 = sbr.rel (%p11) target = $region8
  $region5: #{localization_network.4} parent=0 // loop_body
    %s15 = ssub.s32 %s10, 1
    %s16 = ssub.s32 %s10, 2
    %s17 = sadd.s32 %s10, 1
    %s18 = ssub.s32 %s10, %s17
    %p19 = scmp.eq.s32.totalorder %s18, 0
    %s21 = sadd.s32 %s20, 1
    %s22 = scalar_select %p19, %s20, %s21
    %p25 = pneg %p19
    %p26 = scmp.eq.s32.totalorder %s10, 1
    %p27 = por %p25, %p26
    %p28 = scmp.ne.s32.totalorder %s20, %s23
    %p29 = scmp.eq.s32.totalorder %s10, 0
    %p30 = por %p28, %p29
    %p31 = scmp.ne.s32.totalorder %s20, %s23
    %p32 = scmp.eq.s32.totalorder %s15, 1
    %p33 = por %p31, %p32
    %p34 = scmp.ne.s32.totalorder %s23, %s24
    %p35 = scmp.eq.s32.totalorder %s15, 0
    %p36 = por %p34, %p35
    %p37 = scmp.ne.s32.totalorder %s23, %s24
    %p38 = scmp.eq.s32.totalorder %s16, 1
    %p39 = por %p37, %p38
    %p41 = scmp.ne.s32.totalorder %s24, %s40
    %p42 = scmp.eq.s32.totalorder %s16, 0
    %p43 = por %p41, %p42
    %s45 = sadd.s32 %s44, 1
    %p48 = scmp.eq.s32.totalorder %s10, 1
    %p49 = scmp.ne.s32.totalorder %s44, %s46
    %p50 = scmp.eq.s32.totalorder %s10, 0
    %p51 = por %p49, %p50
    %p52 = scmp.ne.s32.totalorder %s44, %s46
    %p53 = scmp.eq.s32.totalorder %s15, 1
    %p54 = por %p52, %p53
    %p55 = scmp.ne.s32.totalorder %s46, %s47
    %p56 = scmp.eq.s32.totalorder %s15, 0
    %p57 = por %p55, %p56
    %p58 = scmp.ne.s32.totalorder %s46, %s47
    %p59 = scmp.eq.s32.totalorder %s16, 1
    %p60 = por %p58, %p59
    %p62 = scmp.ne.s32.totalorder %s47, %s61
    %p63 = scmp.eq.s32.totalorder %s16, 0
    %p64 = por %p62, %p63
    %s66 = sadd.s32 %s65, 1
    %p69 = scmp.eq.s32.totalorder %s10, 1
    %p70 = scmp.ne.s32.totalorder %s65, %s67
    %p71 = scmp.eq.s32.totalorder %s10, 0
    %p72 = por %p70, %p71
    %p73 = scmp.ne.s32.totalorder %s65, %s67
    %p74 = scmp.eq.s32.totalorder %s15, 1
    %p75 = por %p73, %p74
    %p76 = scmp.ne.s32.totalorder %s67, %s68
    %p77 = scmp.eq.s32.totalorder %s15, 0
    %p78 = por %p76, %p77
    %p79 = scmp.ne.s32.totalorder %s67, %s68
    %p80 = scmp.eq.s32.totalorder %s16, 1
    %p81 = por %p79, %p80
    %p83 = scmp.ne.s32.totalorder %s68, %s82
    %p84 = scmp.eq.s32.totalorder %s16, 0
    %p85 = por %p83, %p84
    %s87 = sadd.s32 %s86, 1
    %p90 = scmp.eq.s32.totalorder %s10, 1
    %p91 = scmp.ne.s32.totalorder %s86, %s88
    %p92 = scmp.eq.s32.totalorder %s10, 0
    %p93 = por %p91, %p92
    %p94 = scmp.ne.s32.totalorder %s86, %s88
    %p95 = scmp.eq.s32.totalorder %s15, 1
    %p96 = por %p94, %p95
    %p97 = scmp.ne.s32.totalorder %s88, %s89
    %p98 = scmp.eq.s32.totalorder %s15, 0
    %p99 = por %p97, %p98
    %p100 = scmp.ne.s32.totalorder %s88, %s89
    %p101 = scmp.eq.s32.totalorder %s16, 1
    %p102 = por %p100, %p101
    %p104 = scmp.ne.s32.totalorder %s89, %s103
    %p105 = scmp.eq.s32.totalorder %s16, 0
    %p106 = por %p104, %p105
    %s107 = ssub.s32 %s10, %s17
    %p108 = scmp.eq.s32.totalorder %s107, 0
    %s110 = sadd.s32 %s109, 1
    %s111 = scalar_select %p108, %s109, %s110
    %p114 = pneg %p108
    %p115 = scmp.eq.s32.totalorder %s10, 1
    %p116 = por %p114, %p115
    %p117 = scmp.ne.s32.totalorder %s109, %s112
    %p118 = scmp.eq.s32.totalorder %s10, 0
    %p119 = por %p117, %p118
    %p120 = scmp.ne.s32.totalorder %s109, %s112
    %p121 = scmp.eq.s32.totalorder %s15, 1
    %p122 = por %p120, %p121
    %p123 = scmp.ne.s32.totalorder %s112, %s113
    %p124 = scmp.eq.s32.totalorder %s15, 0
    %p125 = por %p123, %p124
    %p126 = scmp.ne.s32.totalorder %s112, %s113
    %p127 = scmp.eq.s32.totalorder %s16, 1
    %p128 = por %p126, %p127
    %p130 = scmp.ne.s32.totalorder %s113, %s129
    %p131 = scmp.eq.s32.totalorder %s16, 0
    %p132 = por %p130, %p131
    %p133 = scmp.le.s32.totalorder 1, %s10
    %p134 = scmp.lt.s32.totalorder %s10, 3
    %p135 = pnand %p133, %p134
    %p136 = pneg %p135
    // Predicated region
    $region9: #{localization_network.4} parent=5 // pred_check
      _
    $region10: #{localization_network.4} parent=5 // pred_check_branch
      %138 = sbr.rel (%p135) target = $region12
    $region11: #{localization_network.4} parent=5 // pred_region
      %s139 = ssub.s32 %s10, 1
      // Predicated region
      $region13: #{localization_network.4} parent=11 // pred_check
        %p140 = pneg %p57
      $region14: #{localization_network.4} parent=11 // pred_check_branch
        %142 = sbr.rel (%p140) target = $region16
      $region15: #{localization_network.4} parent=11 // pred_region
        _
      $region16: #{localization_network.4} parent=11 // pred_fallthru
        _
      // Predicated region
      $region17: #{localization_network.4} parent=11 // pred_check
        %p143 = pneg %p78
      $region18: #{localization_network.4} parent=11 // pred_check_branch
        %145 = sbr.rel (%p143) target = $region20
      $region19: #{localization_network.4} parent=11 // pred_region
        _
      $region20: #{localization_network.4} parent=11 // pred_fallthru
        _
      // Predicated region
      $region21: #{localization_network.4} parent=11 // pred_check
        %p146 = pneg %p99
      $region22: #{localization_network.4} parent=11 // pred_check_branch
        %148 = sbr.rel (%p146) target = $region24
      $region23: #{localization_network.4} parent=11 // pred_region
        _
      $region24: #{localization_network.4} parent=11 // pred_fallthru
        _
    $region12: #{localization_network.4} parent=5 // pred_fallthru
      _
    %p149 = scmp.lt.s32.totalorder %s10, 2
    // Predicated region
    $region25: #{localization_network.4} parent=5 // pred_check
      %p150 = pneg %p149
    $region26: #{localization_network.4} parent=5 // pred_check_branch
      %152 = sbr.rel (%p150) target = $region28
    $region27: #{localization_network.4} parent=5 // pred_region
      // Predicated region
      $region29: #{localization_network.4} parent=27 // pred_check
        %p153 = pneg %p30
      $region30: #{localization_network.4} parent=27 // pred_check_branch
        %155 = sbr.rel (%p153) target = $region32
      $region31: #{localization_network.4} parent=27 // pred_region
        %p156 = scmp.lt.s32.totalorder %s10, 1
        %s157 = scalar_select %p156, %s10, 1
        %s158 = smul.addr %s157, 32
        %s159 = smul.addr %s158, 4
        %s160 = scalar_lea.vmem %s0, %s159
      $region32: #{localization_network.4} parent=27 // pred_fallthru
        _
    $region28: #{localization_network.4} parent=5 // pred_fallthru
      _
    %p161 = scmp.le.s32.totalorder 1, %s10
    %p162 = scmp.lt.s32.totalorder %s10, 3
    %p163 = pnand %p161, %p162
    %p164 = pneg %p163
    // Predicated region
    $region33: #{localization_network.4} parent=5 // pred_check
      _
    $region34: #{localization_network.4} parent=5 // pred_check_branch
      %166 = sbr.rel (%p163) target = $region36
    $region35: #{localization_network.4} parent=5 // pred_region
      %s167 = ssub.s32 %s10, 1
      %p168 = scmp.lt.s32.totalorder %s15, 1
      %s169 = scalar_select %p168, %s15, 1
      %s170 = smul.addr %s169, 32
      %s171 = smul.addr %s170, 4
      %s172 = scalar_lea.vmem %s0, %s171
      %p173 = pneg %p36
      %p174 = pneg %p33
      %p175 = pneg %p57
      %p176 = pneg %p54
      %p177 = pneg %p78
      %p178 = pneg %p75
      %p179 = pneg %p99
      %p180 = pneg %p96
      %p181 = pneg %p125
      %p182 = pneg %p122
      %p183 = scmp.lt.s32.totalorder %s15, 1
      %s184 = scalar_select %p183, %s15, 1
      %s185 = smul.addr %s184, 8
      %s186 = smul.addr %s185, 8
      %s187 = scalar_lea.vmem %s4, %s186
      %p188 = scmp.lt.s32.totalorder %s15, 1
      %s189 = scalar_select %p188, %s15, 1
      %s190 = smul.addr %s189, 32
      %s191 = smul.addr %s190, 4
      %s192 = scalar_lea.vmem %s0, %s191
      %p193 = scmp.lt.s32.totalorder %s15, 1
      %s194 = scalar_select %p193, %s15, 1
      %s195 = smul.addr %s194, 8
      %s196 = smul.addr %s195, 8
      %s197 = scalar_lea.vmem %s4, %s196
      %v199 = vld [vmem:[%s192] sm:$0xf]
      %v200 = vld [vmem:[%s192 + $0x4] sm:$0xf]
      %v201 = vld [vmem:[%s192 + $0x8] sm:$0xf]
      %v202 = vld [vmem:[%s192 + $0xc] sm:$0xf]
      %v203 = vld [vmem:[%s192 + $0x10] sm:$0xf]
      %v204 = vld [vmem:[%s192 + $0x14] sm:$0xf]
      %v205 = vld [vmem:[%s192 + $0x18] sm:$0xf]
      %v206 = vld [vmem:[%s192 + $0x1c] sm:$0xf]
      %v207 = vld [vmem:[%s192 + $0x20] sm:$0xf]
      %v208 = vld [vmem:[%s192 + $0x24] sm:$0xf]
      %v209 = vld [vmem:[%s192 + $0x28] sm:$0xf]
      %v210 = vld [vmem:[%s192 + $0x2c] sm:$0xf]
      %v211 = vld [vmem:[%s192 + $0x30] sm:$0xf]
      %v212 = vld [vmem:[%s192 + $0x34] sm:$0xf]
      %v213 = vld [vmem:[%s192 + $0x38] sm:$0xf]
      %v214 = vld [vmem:[%s192 + $0x3c] sm:$0xf]
      %v215 = vld [vmem:[%s192 + $0x40] sm:$0xf]
      %v216 = vld [vmem:[%s192 + $0x44] sm:$0xf]
      %v217 = vld [vmem:[%s192 + $0x48] sm:$0xf]
      %v218 = vld [vmem:[%s192 + $0x4c] sm:$0xf]
      %v219 = vld [vmem:[%s192 + $0x50] sm:$0xf]
      %v220 = vld [vmem:[%s192 + $0x54] sm:$0xf]
      %v221 = vld [vmem:[%s192 + $0x58] sm:$0xf]
      %v222 = vld [vmem:[%s192 + $0x5c] sm:$0xf]
      %v223 = vld [vmem:[%s192 + $0x60] sm:$0xf]
      %v224 = vld [vmem:[%s192 + $0x64] sm:$0xf]
      %v225 = vld [vmem:[%s192 + $0x68] sm:$0xf]
      %v226 = vld [vmem:[%s192 + $0x6c] sm:$0xf]
      %v227 = vld [vmem:[%s192 + $0x70] sm:$0xf]
      %v228 = vld [vmem:[%s192 + $0x74] sm:$0xf]
      %v229 = vld [vmem:[%s192 + $0x78] sm:$0xf]
      %v230 = vld [vmem:[%s192 + $0x7c] sm:$0xf]
      %v231 = vld [vmem:[%s1] sm:$0xf]
      %v232 = vld [vmem:[%s1 + $0x4] sm:$0xf]
      %v233 = vld [vmem:[%s1 + $0x8] sm:$0xf]
      %v234 = vld [vmem:[%s1 + $0xc] sm:$0xf]
      %v235 = vld [vmem:[%s1 + $0x10] sm:$0x3]
      %v268 = vunpack.c.l.b16 %v199
      %v269 = vunpack.c.l.b16 %v200
      %v270 = vunpack.c.l.b16 %v201
      %v271 = vunpack.c.l.b16 %v202
      %v272 = vunpack.c.l.b16 %v203
      %v273 = vunpack.c.l.b16 %v204
      %v274 = vunpack.c.l.b16 %v205
      %v275 = vunpack.c.l.b16 %v206
      %v276 = vunpack.c.l.b16 %v207
      %v277 = vunpack.c.l.b16 %v208
      %v278 = vunpack.c.l.b16 %v209
      %v279 = vunpack.c.l.b16 %v210
      %v280 = vunpack.c.l.b16 %v211
      %v281 = vunpack.c.l.b16 %v212
      %v282 = vunpack.c.l.b16 %v213
      %v283 = vunpack.c.l.b16 %v214
      %v284 = vunpack.c.l.b16 %v215
      %v285 = vunpack.c.l.b16 %v216
      %v286 = vunpack.c.l.b16 %v217
      %v287 = vunpack.c.l.b16 %v218
      %v288 = vunpack.c.l.b16 %v219
      %v289 = vunpack.c.l.b16 %v220
      %v290 = vunpack.c.l.b16 %v221
      %v291 = vunpack.c.l.b16 %v222
      %v292 = vunpack.c.l.b16 %v223
      %v293 = vunpack.c.l.b16 %v224
      %v294 = vunpack.c.l.b16 %v225
      %v295 = vunpack.c.l.b16 %v226
      %v296 = vunpack.c.l.b16 %v227
      %v297 = vunpack.c.l.b16 %v228
      %v298 = vunpack.c.l.b16 %v229
      %v299 = vunpack.c.l.b16 %v230
      %v300 = vpack.c.b16 %v269, %v268
      %v301 = vpack.c.b16 %v271, %v270
      %v302 = vpack.c.b16 %v273, %v272
      %v303 = vpack.c.b16 %v275, %v274
      %v304 = vpack.c.b16 %v277, %v276
      %v305 = vpack.c.b16 %v279, %v278
      %v306 = vpack.c.b16 %v281, %v280
      %v307 = vpack.c.b16 %v283, %v282
      %v308 = vpack.c.b16 %v285, %v284
      %v309 = vpack.c.b16 %v287, %v286
      %v310 = vpack.c.b16 %v289, %v288
      %v311 = vpack.c.b16 %v291, %v290
      %v312 = vpack.c.b16 %v293, %v292
      %v313 = vpack.c.b16 %v295, %v294
      %v314 = vpack.c.b16 %v297, %v296
      %v315 = vpack.c.b16 %v299, %v298
      %v321 = vunpack.c.l.b16 %v231
      %v322 = vunpack.c.l.b16 %v232
      %v323 = vunpack.c.l.b16 %v233
      %v324 = vunpack.c.l.b16 %v234
      %v325 = vunpack.c.l.b16 %v235
      %v326 = vpack.c.b16 %v322, %v321
      %v327 = vpack.c.b16 %v324, %v323
      %v328 = vpack.c.b16 %v325, %v325
      %vm331 = vcmask 293888
      %v333 = vsel %vm331, %v300, 0
      %v336 = vsel %vm331, %v301, 0
      %v339 = vsel %vm331, %v302, 0
      %v342 = vsel %vm331, %v303, 0
      %v345 = vsel %vm331, %v304, 0
      %v348 = vsel %vm331, %v305, 0
      %v351 = vsel %vm331, %v306, 0
      %v354 = vsel %vm331, %v307, 0
      %v357 = vsel %vm331, %v308, 0
      %v360 = vsel %vm331, %v309, 0
      %v363 = vsel %vm331, %v310, 0
      %v366 = vsel %vm331, %v311, 0
      %v369 = vsel %vm331, %v312, 0
      %v372 = vsel %vm331, %v313, 0
      %v375 = vsel %vm331, %v314, 0
      %v378 = vsel %vm331, %v315, 0
      %vm380 = vcmask 1041408
      %v382 = vsel %vm380, %v328, 0
      %384 = vmatpush.bf16.msra.mxu0 0
      %385 = vmatpush.bf16.msra.mxu0 0
      %386 = vmatpush.bf16.msra.mxu0 0
      %387 = vmatpush.bf16.msra.mxu0 0
      %388 = vmatpush.bf16.msra.mxu0 0
      %389 = vmatpush.bf16.msra.mxu0 %v382
      %390 = vmatpush.bf16.msra.mxu0 %v327
      %391 = vmatpush.bf16.msra.mxu0 %v326
      %392 = vmatmul.bf16.gmra.mxu0 %v333
      %v393 = vpop.f32.mrf.mxu0
      %v394 = vadd.f32 0.0, %v393
      %v395 = vpop.f32.mrf.mxu0
      %v396 = vadd.f32 0.0, %v395
      %397 = vmatmul.bf16.gmra.mxu0 %v336
      %v398 = vpop.f32.mrf.mxu0
      %v399 = vadd.f32 0.0, %v398
      %v400 = vpop.f32.mrf.mxu0
      %v401 = vadd.f32 0.0, %v400
      %402 = vmatmul.bf16.gmra.mxu0 %v339
      %v403 = vpop.f32.mrf.mxu0
      %v404 = vadd.f32 0.0, %v403
      %v405 = vpop.f32.mrf.mxu0
      %v406 = vadd.f32 0.0, %v405
      %407 = vmatmul.bf16.gmra.mxu0 %v342
      %v408 = vpop.f32.mrf.mxu0
      %v409 = vadd.f32 0.0, %v408
      %v410 = vpop.f32.mrf.mxu0
      %v411 = vadd.f32 0.0, %v410
      %412 = vmatmul.bf16.gmra.mxu0 %v345
      %v413 = vpop.f32.mrf.mxu0
      %v414 = vadd.f32 0.0, %v413
      %v415 = vpop.f32.mrf.mxu0
      %v416 = vadd.f32 0.0, %v415
      %417 = vmatmul.bf16.gmra.mxu0 %v348
      %v418 = vpop.f32.mrf.mxu0
      %v419 = vadd.f32 0.0, %v418
      %v420 = vpop.f32.mrf.mxu0
      %v421 = vadd.f32 0.0, %v420
      %422 = vmatmul.bf16.gmra.mxu0 %v351
      %v423 = vpop.f32.mrf.mxu0
      %v424 = vadd.f32 0.0, %v423
      %v425 = vpop.f32.mrf.mxu0
      %v426 = vadd.f32 0.0, %v425
      %427 = vmatmul.bf16.gmra.mxu0 %v354
      %v428 = vpop.f32.mrf.mxu0
      %v429 = vadd.f32 0.0, %v428
      %v430 = vpop.f32.mrf.mxu0
      %v431 = vadd.f32 0.0, %v430
      %432 = vmatmul.bf16.gmra.mxu0 %v357
      %v433 = vpop.f32.mrf.mxu0
      %v434 = vadd.f32 0.0, %v433
      %v435 = vpop.f32.mrf.mxu0
      %v436 = vadd.f32 0.0, %v435
      %437 = vmatmul.bf16.gmra.mxu0 %v360
      %v438 = vpop.f32.mrf.mxu0
      %v439 = vadd.f32 0.0, %v438
      %v440 = vpop.f32.mrf.mxu0
      %v441 = vadd.f32 0.0, %v440
      %442 = vmatmul.bf16.gmra.mxu0 %v363
      %v443 = vpop.f32.mrf.mxu0
      %v444 = vadd.f32 0.0, %v443
      %v445 = vpop.f32.mrf.mxu0
      %v446 = vadd.f32 0.0, %v445
      %447 = vmatmul.bf16.gmra.mxu0 %v366
      %v448 = vpop.f32.mrf.mxu0
      %v449 = vadd.f32 0.0, %v448
      %v450 = vpop.f32.mrf.mxu0
      %v451 = vadd.f32 0.0, %v450
      %452 = vmatmul.bf16.gmra.mxu0 %v369
      %v453 = vpop.f32.mrf.mxu0
      %v454 = vadd.f32 0.0, %v453
      %v455 = vpop.f32.mrf.mxu0
      %v456 = vadd.f32 0.0, %v455
      %457 = vmatmul.bf16.gmra.mxu0 %v372
      %v458 = vpop.f32.mrf.mxu0
      %v459 = vadd.f32 0.0, %v458
      %v460 = vpop.f32.mrf.mxu0
      %v461 = vadd.f32 0.0, %v460
      %462 = vmatmul.bf16.gmra.mxu0 %v375
      %v463 = vpop.f32.mrf.mxu0
      %v464 = vadd.f32 0.0, %v463
      %v465 = vpop.f32.mrf.mxu0
      %v466 = vadd.f32 0.0, %v465
      %467 = vmatmul.bf16.gmra.mxu0 %v378
      %v468 = vpop.f32.mrf.mxu0
      %v469 = vadd.f32 0.0, %v468
      %v470 = vpop.f32.mrf.mxu0
      %v471 = vadd.f32 0.0, %v470
      %472 = vdwg.mxu0
      %v473 = vld [vmem:[%s2] sm:$0x1]
      %v475 = vperm.slane %v473, 0
      %v477 = vmul.f32 %v394, %v475
      %v478 = vmul.f32 %v396, %v475
      %v479 = vmul.f32 %v399, %v475
      %v480 = vmul.f32 %v401, %v475
      %v481 = vmul.f32 %v404, %v475
      %v482 = vmul.f32 %v406, %v475
      %v483 = vmul.f32 %v409, %v475
      %v484 = vmul.f32 %v411, %v475
      %v485 = vmul.f32 %v414, %v475
      %v486 = vmul.f32 %v416, %v475
      %v487 = vmul.f32 %v419, %v475
      %v488 = vmul.f32 %v421, %v475
      %v489 = vmul.f32 %v424, %v475
      %v490 = vmul.f32 %v426, %v475
      %v491 = vmul.f32 %v429, %v475
      %v492 = vmul.f32 %v431, %v475
      %v493 = vmul.f32 %v434, %v475
      %v494 = vmul.f32 %v436, %v475
      %v495 = vmul.f32 %v439, %v475
      %v496 = vmul.f32 %v441, %v475
      %v497 = vmul.f32 %v444, %v475
      %v498 = vmul.f32 %v446, %v475
      %v499 = vmul.f32 %v449, %v475
      %v500 = vmul.f32 %v451, %v475
      %v501 = vmul.f32 %v454, %v475
      %v502 = vmul.f32 %v456, %v475
      %v503 = vmul.f32 %v459, %v475
      %v504 = vmul.f32 %v461, %v475
      %v505 = vmul.f32 %v464, %v475
      %v506 = vmul.f32 %v466, %v475
      %v507 = vmul.f32 %v469, %v475
      %v508 = vmul.f32 %v471, %v475
      %v509 = vld [vmem:[%s3] sm:$0x1]
      %v511 = vperm.slane %v509, 0
      %v513 = vadd.f32 %v477, %v511
      %v514 = vadd.f32 %v478, %v511
      %v515 = vadd.f32 %v479, %v511
      %v516 = vadd.f32 %v480, %v511
      %v517 = vadd.f32 %v481, %v511
      %v518 = vadd.f32 %v482, %v511
      %v519 = vadd.f32 %v483, %v511
      %v520 = vadd.f32 %v484, %v511
      %v521 = vadd.f32 %v485, %v511
      %v522 = vadd.f32 %v486, %v511
      %v523 = vadd.f32 %v487, %v511
      %v524 = vadd.f32 %v488, %v511
      %v525 = vadd.f32 %v489, %v511
      %v526 = vadd.f32 %v490, %v511
      %v527 = vadd.f32 %v491, %v511
      %v528 = vadd.f32 %v492, %v511
      %v529 = vadd.f32 %v493, %v511
      %v530 = vadd.f32 %v494, %v511
      %v531 = vadd.f32 %v495, %v511
      %v532 = vadd.f32 %v496, %v511
      %v533 = vadd.f32 %v497, %v511
      %v534 = vadd.f32 %v498, %v511
      %v535 = vadd.f32 %v499, %v511
      %v536 = vadd.f32 %v500, %v511
      %v537 = vadd.f32 %v501, %v511
      %v538 = vadd.f32 %v502, %v511
      %v539 = vadd.f32 %v503, %v511
      %v540 = vadd.f32 %v504, %v511
      %v541 = vadd.f32 %v505, %v511
      %v542 = vadd.f32 %v506, %v511
      %v543 = vadd.f32 %v507, %v511
      %v544 = vadd.f32 %v508, %v511
      %v545 = vmax.f32 %v513, 0.0
      %v546 = vmax.f32 %v514, 0.0
      %v547 = vmax.f32 %v515, 0.0
      %v548 = vmax.f32 %v516, 0.0
      %v549 = vmax.f32 %v517, 0.0
      %v550 = vmax.f32 %v518, 0.0
      %v551 = vmax.f32 %v519, 0.0
      %v552 = vmax.f32 %v520, 0.0
      %v553 = vmax.f32 %v521, 0.0
      %v554 = vmax.f32 %v522, 0.0
      %v555 = vmax.f32 %v523, 0.0
      %v556 = vmax.f32 %v524, 0.0
      %v557 = vmax.f32 %v525, 0.0
      %v558 = vmax.f32 %v526, 0.0
      %v559 = vmax.f32 %v527, 0.0
      %v560 = vmax.f32 %v528, 0.0
      %v561 = vmax.f32 %v529, 0.0
      %v562 = vmax.f32 %v530, 0.0
      %v563 = vmax.f32 %v531, 0.0
      %v564 = vmax.f32 %v532, 0.0
      %v565 = vmax.f32 %v533, 0.0
      %v566 = vmax.f32 %v534, 0.0
      %v567 = vmax.f32 %v535, 0.0
      %v568 = vmax.f32 %v536, 0.0
      %v569 = vmax.f32 %v537, 0.0
      %v570 = vmax.f32 %v538, 0.0
      %v571 = vmax.f32 %v539, 0.0
      %v572 = vmax.f32 %v540, 0.0
      %v573 = vmax.f32 %v541, 0.0
      %v574 = vmax.f32 %v542, 0.0
      %v575 = vmax.f32 %v543, 0.0
      %v576 = vmax.f32 %v544, 0.0
      %v577 = vmax.f32 %v545, %v553
      %v578 = vmax.f32 %v546, %v554
      %v579 = vmax.f32 %v547, %v555
      %v580 = vmax.f32 %v548, %v556
      %v581 = vmax.f32 %v549, %v557
      %v582 = vmax.f32 %v550, %v558
      %v583 = vmax.f32 %v551, %v559
      %v584 = vmax.f32 %v552, %v560
      %v585 = vmax.f32 %v561, %v569
      %v586 = vmax.f32 %v562, %v570
      %v587 = vmax.f32 %v563, %v571
      %v588 = vmax.f32 %v564, %v572
      %v589 = vmax.f32 %v565, %v573
      %v590 = vmax.f32 %v566, %v574
      %v591 = vmax.f32 %v567, %v575
      %v592 = vmax.f32 %v568, %v576
      %v593 = vmax.f32 %v577, %v585
      %v594 = vmax.f32 %v578, %v586
      %v595 = vmax.f32 %v579, %v587
      %v596 = vmax.f32 %v580, %v588
      %v597 = vmax.f32 %v581, %v589
      %v598 = vmax.f32 %v582, %v590
      %v599 = vmax.f32 %v583, %v591
      %v600 = vmax.f32 %v584, %v592
      %vm601 = vcmask 130048
      %602 = vst.msk [vmem:[%s197] sm:$0xff] %vm601, %v593
      %603 = vst.msk [vmem:[%s197 + $0x8] sm:$0xff] %vm601, %v594
      %604 = vst.msk [vmem:[%s197 + $0x10] sm:$0xff] %vm601, %v595
      %605 = vst.msk [vmem:[%s197 + $0x18] sm:$0xff] %vm601, %v596
      %606 = vst.msk [vmem:[%s197 + $0x20] sm:$0xff] %vm601, %v597
      %607 = vst.msk [vmem:[%s197 + $0x28] sm:$0xff] %vm601, %v598
      %608 = vst.msk [vmem:[%s197 + $0x30] sm:$0xff] %vm601, %v599
      %609 = vst.msk [vmem:[%s197 + $0x38] sm:$0xff] %vm601, %v600
      %p610 = scmp.lt.s32.totalorder %s15, 1
      %s611 = scalar_select %p610, %s15, 1
      %s612 = smul.addr %s611, 8
      %s613 = smul.addr %s612, 8
      %s614 = scalar_lea.vmem %s4, %s613
      // Predicated region
      $region37: #{localization_network.4} parent=35 // pred_check
        %p615 = pneg %p122
      $region38: #{localization_network.4} parent=35 // pred_check_branch
        %617 = sbr.rel (%p615) target = $region40
      $region39: #{localization_network.4} parent=35 // pred_region
        _
      $region40: #{localization_network.4} parent=35 // pred_fallthru
        _
    $region36: #{localization_network.4} parent=5 // pred_fallthru
      _
    %p618 = scmp.le.s32.totalorder 2, %s10
    // Predicated region
    $region41: #{localization_network.4} parent=5 // pred_check
      %p619 = pneg %p618
    $region42: #{localization_network.4} parent=5 // pred_check_branch
      %621 = sbr.rel (%p619) target = $region44
    $region43: #{localization_network.4} parent=5 // pred_region
      %s622 = ssub.s32 %s10, 2
      // Predicated region
      $region45: #{localization_network.4} parent=43 // pred_check
        %p623 = pneg %p128
      $region46: #{localization_network.4} parent=43 // pred_check_branch
        %625 = sbr.rel (%p623) target = $region48
      $region47: #{localization_network.4} parent=43 // pred_region
        %p626 = scmp.lt.s32.totalorder %s16, 1
        %s627 = scalar_select %p626, %s16, 1
        %s628 = smul.addr %s627, 8
        %s629 = smul.addr %s628, 8
        %s630 = scalar_lea.vmem %s4, %s629
      $region48: #{localization_network.4} parent=43 // pred_fallthru
        _
    $region44: #{localization_network.4} parent=5 // pred_fallthru
      _
  $region6: #{localization_network.4} parent=0 // loop_footer
    %s14 = sadd.s32 1, %s10
  $region7: #{localization_network.4} parent=0 // loop_footer_branch
    %9 = sbr.rel target = $region3
  $region8: #{localization_network.4} parent=0 // loop_exit
    _

// kernel: localization_network.5
$region0: #{localization_network.5}
  #allocation0 [shape = 'u32[]', space=smem, size = 0x4, offset = 0x4, fixed_abs, tag = 'smem constant byte address 0x4 - core index']
  #allocation1 [shape = 'u32[72,128]{1,0:T(1,128)}', space=vmem, size = 0x9000, scoped, tag = 'internal scratch']
  %s0 = inlined_call_operand.vmem [shape: bf16[2,64,144], index: 0, kind: input, shape index: {}]
  %s1 = inlined_call_operand.vmem [shape: bf16[144,32], index: 1, kind: input, shape index: {}]
  %s2 = inlined_call_operand.vmem [shape: f32[1,32], index: 2, kind: input, shape index: {}]
  %s3 = inlined_call_operand.vmem [shape: f32[1,32], index: 3, kind: input, shape index: {}]
  %s4 = inlined_call_operand.vmem [shape: f32[2,16,32], index: 4, kind: output, shape index: {}]
  %s5 = sld [smem:[#allocation0]]
  $region49: #{localization_network.5} parent=0
    _
  %s7 = ssub.s32 1, %s5
  %s8 = scalar_select 0, %s7, %s5
  loop: start=0, step=1, limit=4
  $region2: #{localization_network.5} parent=0 // loop_pre_header
    _
  $region3: #{localization_network.5} parent=0 // loop_header
    %s10 = sphi 0, %s14
    %p11 = scmp.ge.s32.totalorder %s10, 4
    %s20 = sphi 0, %s22
    %s23 = sphi 0, %s20
    %s24 = sphi 0, %s23
    %s40 = sphi 0, %s24
    %s44 = sphi 0, %s44
    %s46 = sphi 0, %s44
    %s47 = sphi 0, %s46
    %s61 = sphi 0, %s47
    %s65 = sphi 0, %s65
    %s67 = sphi 0, %s65
    %s68 = sphi 0, %s67
    %s82 = sphi 0, %s68
    %s86 = sphi 0, %s86
    %s88 = sphi 0, %s86
    %s89 = sphi 0, %s88
    %s103 = sphi 0, %s89
    %s109 = sphi 0, %s111
    %s112 = sphi 0, %s109
    %s113 = sphi 0, %s112
    %s129 = sphi 0, %s113
  $region4: #{localization_network.5} parent=0 // loop_header_branch
    %13 = sbr.rel (%p11) target = $region8
  $region5: #{localization_network.5} parent=0 // loop_body
    %s15 = ssub.s32 %s10, 1
    %s16 = ssub.s32 %s10, 2
    %s17 = sadd.s32 %s10, 1
    %s18 = ssub.s32 %s10, %s17
    %p19 = scmp.eq.s32.totalorder %s18, 0
    %s21 = sadd.s32 %s20, 1
    %s22 = scalar_select %p19, %s20, %s21
    %p25 = pneg %p19
    %p26 = scmp.eq.s32.totalorder %s10, 1
    %p27 = por %p25, %p26
    %p28 = scmp.ne.s32.totalorder %s20, %s23
    %p29 = scmp.eq.s32.totalorder %s10, 0
    %p30 = por %p28, %p29
    %p31 = scmp.ne.s32.totalorder %s20, %s23
    %p32 = scmp.eq.s32.totalorder %s15, 1
    %p33 = por %p31, %p32
    %p34 = scmp.ne.s32.totalorder %s23, %s24
    %p35 = scmp.eq.s32.totalorder %s15, 0
    %p36 = por %p34, %p35
    %p37 = scmp.ne.s32.totalorder %s23, %s24
    %p38 = scmp.eq.s32.totalorder %s16, 1
    %p39 = por %p37, %p38
    %p41 = scmp.ne.s32.totalorder %s24, %s40
    %p42 = scmp.eq.s32.totalorder %s16, 0
    %p43 = por %p41, %p42
    %s45 = sadd.s32 %s44, 1
    %p48 = scmp.eq.s32.totalorder %s10, 1
    %p49 = scmp.ne.s32.totalorder %s44, %s46
    %p50 = scmp.eq.s32.totalorder %s10, 0
    %p51 = por %p49, %p50
    %p52 = scmp.ne.s32.totalorder %s44, %s46
    %p53 = scmp.eq.s32.totalorder %s15, 1
    %p54 = por %p52, %p53
    %p55 = scmp.ne.s32.totalorder %s46, %s47
    %p56 = scmp.eq.s32.totalorder %s15, 0
    %p57 = por %p55, %p56
    %p58 = scmp.ne.s32.totalorder %s46, %s47
    %p59 = scmp.eq.s32.totalorder %s16, 1
    %p60 = por %p58, %p59
    %p62 = scmp.ne.s32.totalorder %s47, %s61
    %p63 = scmp.eq.s32.totalorder %s16, 0
    %p64 = por %p62, %p63
    %s66 = sadd.s32 %s65, 1
    %p69 = scmp.eq.s32.totalorder %s10, 1
    %p70 = scmp.ne.s32.totalorder %s65, %s67
    %p71 = scmp.eq.s32.totalorder %s10, 0
    %p72 = por %p70, %p71
    %p73 = scmp.ne.s32.totalorder %s65, %s67
    %p74 = scmp.eq.s32.totalorder %s15, 1
    %p75 = por %p73, %p74
    %p76 = scmp.ne.s32.totalorder %s67, %s68
    %p77 = scmp.eq.s32.totalorder %s15, 0
    %p78 = por %p76, %p77
    %p79 = scmp.ne.s32.totalorder %s67, %s68
    %p80 = scmp.eq.s32.totalorder %s16, 1
    %p81 = por %p79, %p80
    %p83 = scmp.ne.s32.totalorder %s68, %s82
    %p84 = scmp.eq.s32.totalorder %s16, 0
    %p85 = por %p83, %p84
    %s87 = sadd.s32 %s86, 1
    %p90 = scmp.eq.s32.totalorder %s10, 1
    %p91 = scmp.ne.s32.totalorder %s86, %s88
    %p92 = scmp.eq.s32.totalorder %s10, 0
    %p93 = por %p91, %p92
    %p94 = scmp.ne.s32.totalorder %s86, %s88
    %p95 = scmp.eq.s32.totalorder %s15, 1
    %p96 = por %p94, %p95
    %p97 = scmp.ne.s32.totalorder %s88, %s89
    %p98 = scmp.eq.s32.totalorder %s15, 0
    %p99 = por %p97, %p98
    %p100 = scmp.ne.s32.totalorder %s88, %s89
    %p101 = scmp.eq.s32.totalorder %s16, 1
    %p102 = por %p100, %p101
    %p104 = scmp.ne.s32.totalorder %s89, %s103
    %p105 = scmp.eq.s32.totalorder %s16, 0
    %p106 = por %p104, %p105
    %s107 = ssub.s32 %s10, %s17
    %p108 = scmp.eq.s32.totalorder %s107, 0
    %s110 = sadd.s32 %s109, 1
    %s111 = scalar_select %p108, %s109, %s110
    %p114 = pneg %p108
    %p115 = scmp.eq.s32.totalorder %s10, 1
    %p116 = por %p114, %p115
    %p117 = scmp.ne.s32.totalorder %s109, %s112
    %p118 = scmp.eq.s32.totalorder %s10, 0
    %p119 = por %p117, %p118
    %p120 = scmp.ne.s32.totalorder %s109, %s112
    %p121 = scmp.eq.s32.totalorder %s15, 1
    %p122 = por %p120, %p121
    %p123 = scmp.ne.s32.totalorder %s112, %s113
    %p124 = scmp.eq.s32.totalorder %s15, 0
    %p125 = por %p123, %p124
    %p126 = scmp.ne.s32.totalorder %s112, %s113
    %p127 = scmp.eq.s32.totalorder %s16, 1
    %p128 = por %p126, %p127
    %p130 = scmp.ne.s32.totalorder %s113, %s129
    %p131 = scmp.eq.s32.totalorder %s16, 0
    %p132 = por %p130, %p131
    %p133 = scmp.le.s32.totalorder 1, %s10
    %p134 = scmp.lt.s32.totalorder %s10, 3
    %p135 = pnand %p133, %p134
    %p136 = pneg %p135
    // Predicated region
    $region9: #{localization_network.5} parent=5 // pred_check
      _
    $region10: #{localization_network.5} parent=5 // pred_check_branch
      %138 = sbr.rel (%p135) target = $region12
    $region11: #{localization_network.5} parent=5 // pred_region
      %s139 = ssub.s32 %s10, 1
      // Predicated region
      $region13: #{localization_network.5} parent=11 // pred_check
        %p140 = pneg %p57
      $region14: #{localization_network.5} parent=11 // pred_check_branch
        %142 = sbr.rel (%p140) target = $region16
      $region15: #{localization_network.5} parent=11 // pred_region
        _
      $region16: #{localization_network.5} parent=11 // pred_fallthru
        _
      // Predicated region
      $region17: #{localization_network.5} parent=11 // pred_check
        %p143 = pneg %p78
      $region18: #{localization_network.5} parent=11 // pred_check_branch
        %145 = sbr.rel (%p143) target = $region20
      $region19: #{localization_network.5} parent=11 // pred_region
        _
      $region20: #{localization_network.5} parent=11 // pred_fallthru
        _
      // Predicated region
      $region21: #{localization_network.5} parent=11 // pred_check
        %p146 = pneg %p99
      $region22: #{localization_network.5} parent=11 // pred_check_branch
        %148 = sbr.rel (%p146) target = $region24
      $region23: #{localization_network.5} parent=11 // pred_region
        _
      $region24: #{localization_network.5} parent=11 // pred_fallthru
        _
    $region12: #{localization_network.5} parent=5 // pred_fallthru
      _
    %p149 = scmp.lt.s32.totalorder %s10, 2
    // Predicated region
    $region25: #{localization_network.5} parent=5 // pred_check
      %p150 = pneg %p149
    $region26: #{localization_network.5} parent=5 // pred_check_branch
      %152 = sbr.rel (%p150) target = $region28
    $region27: #{localization_network.5} parent=5 // pred_region
      // Predicated region
      $region29: #{localization_network.5} parent=27 // pred_check
        %p153 = pneg %p30
      $region30: #{localization_network.5} parent=27 // pred_check_branch
        %155 = sbr.rel (%p153) target = $region32
      $region31: #{localization_network.5} parent=27 // pred_region
        %p156 = scmp.lt.s32.totalorder %s10, 1
        %s157 = scalar_select %p156, %s10, 1
        %s158 = smul.addr %s157, 16
        %s159 = smul.addr %s158, 4
        %s160 = scalar_lea.vmem %s0, %s159
      $region32: #{localization_network.5} parent=27 // pred_fallthru
        _
    $region28: #{localization_network.5} parent=5 // pred_fallthru
      _
    %p161 = scmp.le.s32.totalorder 1, %s10
    %p162 = scmp.lt.s32.totalorder %s10, 3
    %p163 = pnand %p161, %p162
    %p164 = pneg %p163
    // Predicated region
    $region33: #{localization_network.5} parent=5 // pred_check
      _
    $region34: #{localization_network.5} parent=5 // pred_check_branch
      %166 = sbr.rel (%p163) target = $region36
    $region35: #{localization_network.5} parent=5 // pred_region
      %s167 = ssub.s32 %s10, 1
      %p168 = scmp.lt.s32.totalorder %s15, 1
      %s169 = scalar_select %p168, %s15, 1
      %s170 = smul.addr %s169, 16
      %s171 = smul.addr %s170, 4
      %s172 = scalar_lea.vmem %s0, %s171
      %p173 = pneg %p36
      %p174 = pneg %p33
      %p175 = pneg %p57
      %p176 = pneg %p54
      %p177 = pneg %p78
      %p178 = pneg %p75
      %p179 = pneg %p99
      %p180 = pneg %p96
      %p181 = pneg %p125
      %p182 = pneg %p122
      %p183 = scmp.lt.s32.totalorder %s15, 1
      %s184 = scalar_select %p183, %s15, 1
      %s185 = smul.addr %s184, 2
      %s186 = smul.addr %s185, 8
      %s187 = scalar_lea.vmem %s4, %s186
      %p188 = scmp.lt.s32.totalorder %s15, 1
      %s189 = scalar_select %p188, %s15, 1
      %s190 = smul.addr %s189, 16
      %s191 = smul.addr %s190, 4
      %s192 = scalar_lea.vmem %s0, %s191
      %p193 = scmp.lt.s32.totalorder %s15, 1
      %s194 = scalar_select %p193, %s15, 1
      %s195 = smul.addr %s194, 2
      %s196 = smul.addr %s195, 8
      %s197 = scalar_lea.vmem %s4, %s196
      %v199 = vld [vmem:[%s192] sm:$0xff]
      %v200 = vld [vmem:[%s192 + $0x8] sm:$0xff]
      %v201 = vld [vmem:[%s192 + $0x10] sm:$0xff]
      %v202 = vld [vmem:[%s192 + $0x18] sm:$0xff]
      %v203 = vld [vmem:[%s192 + $0x20] sm:$0xff]
      %v204 = vld [vmem:[%s192 + $0x28] sm:$0xff]
      %v205 = vld [vmem:[%s192 + $0x30] sm:$0xff]
      %v206 = vld [vmem:[%s192 + $0x38] sm:$0xff]
      %v207 = vld [vmem:[%s1] sm:$0xf]
      %v208 = vld [vmem:[%s1 + $0x4] sm:$0xf]
      %v209 = vld [vmem:[%s1 + $0x8] sm:$0xf]
      %v210 = vld [vmem:[%s1 + $0xc] sm:$0xf]
      %v211 = vld [vmem:[%s1 + $0x10] sm:$0xf]
      %v212 = vld [vmem:[%s1 + $0x14] sm:$0xf]
      %v213 = vld [vmem:[%s1 + $0x18] sm:$0xf]
      %v214 = vld [vmem:[%s1 + $0x1c] sm:$0xf]
      %v215 = vld [vmem:[%s1 + $0x20] sm:$0xf]
      %v216 = vld [vmem:[%s1 + $0x24] sm:$0xf]
      %v217 = vld [vmem:[%s1 + $0x28] sm:$0xf]
      %v218 = vld [vmem:[%s1 + $0x2c] sm:$0xf]
      %v219 = vld [vmem:[%s1 + $0x30] sm:$0xf]
      %v220 = vld [vmem:[%s1 + $0x34] sm:$0xf]
      %v221 = vld [vmem:[%s1 + $0x38] sm:$0xf]
      %v222 = vld [vmem:[%s1 + $0x3c] sm:$0xf]
      %v223 = vld [vmem:[%s1 + $0x40] sm:$0xf]
      %v224 = vld [vmem:[%s1 + $0x44] sm:$0xf]
      %v233 = vunpack.c.l.b16 %v199
      %v234 = vunpack.c.h.b16 %v199
      %v235 = vunpack.c.l.b16 %v200
      %v236 = vunpack.c.h.b16 %v200
      %v237 = vunpack.c.l.b16 %v201
      %v238 = vunpack.c.h.b16 %v201
      %v239 = vunpack.c.l.b16 %v202
      %v240 = vunpack.c.h.b16 %v202
      %v241 = vunpack.c.l.b16 %v203
      %v242 = vunpack.c.h.b16 %v203
      %v243 = vunpack.c.l.b16 %v204
      %v244 = vunpack.c.h.b16 %v204
      %v245 = vunpack.c.l.b16 %v205
      %v246 = vunpack.c.h.b16 %v205
      %v247 = vunpack.c.l.b16 %v206
      %v248 = vunpack.c.h.b16 %v206
      %v249 = vpack.c.b16 %v235, %v233
      %v250 = vpack.c.b16 %v236, %v234
      %v251 = vpack.c.b16 %v239, %v237
      %v252 = vpack.c.b16 %v240, %v238
      %v253 = vpack.c.b16 %v243, %v241
      %v254 = vpack.c.b16 %v244, %v242
      %v255 = vpack.c.b16 %v247, %v245
      %v256 = vpack.c.b16 %v248, %v246
      %v279 = vunpack.c.l.b16 %v207
      %v280 = vunpack.c.l.b16 %v208
      %v281 = vunpack.c.l.b16 %v209
      %v282 = vunpack.c.l.b16 %v210
      %v283 = vunpack.c.l.b16 %v211
      %v284 = vunpack.c.l.b16 %v212
      %v285 = vunpack.c.l.b16 %v213
      %v286 = vunpack.c.l.b16 %v214
      %v287 = vunpack.c.l.b16 %v215
      %v288 = vunpack.c.l.b16 %v216
      %v289 = vunpack.c.l.b16 %v217
      %v290 = vunpack.c.l.b16 %v218
      %v291 = vunpack.c.l.b16 %v219
      %v292 = vunpack.c.l.b16 %v220
      %v293 = vunpack.c.l.b16 %v221
      %v294 = vunpack.c.l.b16 %v222
      %v295 = vunpack.c.l.b16 %v223
      %v296 = vunpack.c.l.b16 %v224
      %v297 = vpack.c.b16 %v280, %v279
      %v298 = vpack.c.b16 %v282, %v281
      %v299 = vpack.c.b16 %v284, %v283
      %v300 = vpack.c.b16 %v286, %v285
      %v301 = vpack.c.b16 %v288, %v287
      %v302 = vpack.c.b16 %v290, %v289
      %v303 = vpack.c.b16 %v292, %v291
      %v304 = vpack.c.b16 %v294, %v293
      %v305 = vpack.c.b16 %v296, %v295
      %vm315 = vcmask 130048
      %v317 = vsel %vm315, %v250, 0
      %v320 = vsel %vm315, %v252, 0
      %v323 = vsel %vm315, %v254, 0
      %v326 = vsel %vm315, %v256, 0
      %328 = vmatpush.bf16.msra.mxu0 %v304
      %329 = vmatpush.bf16.msra.mxu0 %v303
      %330 = vmatpush.bf16.msra.mxu0 %v302
      %331 = vmatpush.bf16.msra.mxu0 %v301
      %332 = vmatpush.bf16.msra.mxu0 %v300
      %333 = vmatpush.bf16.msra.mxu0 %v299
      %334 = vmatpush.bf16.msra.mxu0 %v298
      %335 = vmatpush.bf16.msra.mxu0 %v297
      %336 = vmatmul.bf16.gmra.mxu0 %v249
      %v337 = vpop.f32.mrf.mxu0
      %v338 = vadd.f32 0.0, %v337
      %v339 = vpop.f32.mrf.mxu0
      %v340 = vadd.f32 0.0, %v339
      %341 = vmatmul.bf16.gmra.mxu0 %v251
      %v342 = vpop.f32.mrf.mxu0
      %v343 = vadd.f32 0.0, %v342
      %v344 = vpop.f32.mrf.mxu0
      %v345 = vadd.f32 0.0, %v344
      %346 = vmatmul.bf16.gmra.mxu0 %v253
      %v347 = vpop.f32.mrf.mxu0
      %v348 = vadd.f32 0.0, %v347
      %v349 = vpop.f32.mrf.mxu0
      %v350 = vadd.f32 0.0, %v349
      %351 = vmatmul.bf16.gmra.mxu0 %v255
      %v352 = vpop.f32.mrf.mxu0
      %v353 = vadd.f32 0.0, %v352
      %v354 = vpop.f32.mrf.mxu0
      %v355 = vadd.f32 0.0, %v354
      %356 = vdwg.mxu0
      %357 = vmatpush.bf16.msra.mxu0 0
      %358 = vmatpush.bf16.msra.mxu0 0
      %359 = vmatpush.bf16.msra.mxu0 0
      %360 = vmatpush.bf16.msra.mxu0 0
      %361 = vmatpush.bf16.msra.mxu0 0
      %362 = vmatpush.bf16.msra.mxu0 0
      %363 = vmatpush.bf16.msra.mxu0 0
      %364 = vmatpush.bf16.msra.mxu0 %v305
      %365 = vmatmul.bf16.gmra.mxu0 %v317
      %v366 = vpop.f32.mrf.mxu0
      %v367 = vadd.f32 %v338, %v366
      %v368 = vpop.f32.mrf.mxu0
      %v369 = vadd.f32 %v340, %v368
      %370 = vmatmul.bf16.gmra.mxu0 %v320
      %v371 = vpop.f32.mrf.mxu0
      %v372 = vadd.f32 %v343, %v371
      %v373 = vpop.f32.mrf.mxu0
      %v374 = vadd.f32 %v345, %v373
      %375 = vmatmul.bf16.gmra.mxu0 %v323
      %v376 = vpop.f32.mrf.mxu0
      %v377 = vadd.f32 %v348, %v376
      %v378 = vpop.f32.mrf.mxu0
      %v379 = vadd.f32 %v350, %v378
      %380 = vmatmul.bf16.gmra.mxu0 %v326
      %v381 = vpop.f32.mrf.mxu0
      %v382 = vadd.f32 %v353, %v381
      %v383 = vpop.f32.mrf.mxu0
      %v384 = vadd.f32 %v355, %v383
      %385 = vdwg.mxu0
      %v386 = vld [vmem:[%s2] sm:$0x1]
      %v388 = vperm.slane %v386, 0
      %v390 = vmul.f32 %v367, %v388
      %v391 = vmul.f32 %v369, %v388
      %v392 = vmul.f32 %v372, %v388
      %v393 = vmul.f32 %v374, %v388
      %v394 = vmul.f32 %v377, %v388
      %v395 = vmul.f32 %v379, %v388
      %v396 = vmul.f32 %v382, %v388
      %v397 = vmul.f32 %v384, %v388
      %v398 = vld [vmem:[%s3] sm:$0x1]
      %v400 = vperm.slane %v398, 0
      %v402 = vadd.f32 %v390, %v400
      %v403 = vadd.f32 %v391, %v400
      %v404 = vadd.f32 %v392, %v400
      %v405 = vadd.f32 %v393, %v400
      %v406 = vadd.f32 %v394, %v400
      %v407 = vadd.f32 %v395, %v400
      %v408 = vadd.f32 %v396, %v400
      %v409 = vadd.f32 %v397, %v400
      %v410 = vmax.f32 %v402, 0.0
      %v411 = vmax.f32 %v403, 0.0
      %v412 = vmax.f32 %v404, 0.0
      %v413 = vmax.f32 %v405, 0.0
      %v414 = vmax.f32 %v406, 0.0
      %v415 = vmax.f32 %v407, 0.0
      %v416 = vmax.f32 %v408, 0.0
      %v417 = vmax.f32 %v409, 0.0
      %v418 = vmax.f32 %v410, %v412
      %v419 = vmax.f32 %v411, %v413
      %v420 = vmax.f32 %v414, %v416
      %v421 = vmax.f32 %v415, %v417
      %v422 = vmax.f32 %v418, %v420
      %v423 = vmax.f32 %v419, %v421
      %vm424 = vcmask 261120
      %425 = vst.msk [vmem:[%s197] sm:$0xff] %vm424, %v422
      %426 = vst.msk [vmem:[%s197 + $0x8] sm:$0xff] %vm424, %v423
      %p427 = scmp.lt.s32.totalorder %s15, 1
      %s428 = scalar_select %p427, %s15, 1
      %s429 = smul.addr %s428, 2
      %s430 = smul.addr %s429, 8
      %s431 = scalar_lea.vmem %s4, %s430
      // Predicated region
      $region37: #{localization_network.5} parent=35 // pred_check
        %p432 = pneg %p122
      $region38: #{localization_network.5} parent=35 // pred_check_branch
        %434 = sbr.rel (%p432) target = $region40
      $region39: #{localization_network.5} parent=35 // pred_region
        _
      $region40: #{localization_network.5} parent=35 // pred_fallthru
        _
    $region36: #{localization_network.5} parent=5 // pred_fallthru
      _
    %p435 = scmp.le.s32.totalorder 2, %s10
    // Predicated region
    $region41: #{localization_network.5} parent=5 // pred_check
      %p436 = pneg %p435
    $region42: #{localization_network.5} parent=5 // pred_check_branch
      %438 = sbr.rel (%p436) target = $region44
    $region43: #{localization_network.5} parent=5 // pred_region
      %s439 = ssub.s32 %s10, 2
      // Predicated region
      $region45: #{localization_network.5} parent=43 // pred_check
        %p440 = pneg %p128
      $region46: #{localization_network.5} parent=43 // pred_check_branch
        %442 = sbr.rel (%p440) target = $region48
      $region47: #{localization_network.5} parent=43 // pred_region
        %p443 = scmp.lt.s32.totalorder %s16, 1
        %s444 = scalar_select %p443, %s16, 1
        %s445 = smul.addr %s444, 2
        %s446 = smul.addr %s445, 8
        %s447 = scalar_lea.vmem %s4, %s446
      $region48: #{localization_network.5} parent=43 // pred_fallthru
        _
    $region44: #{localization_network.5} parent=5 // pred_fallthru
      _
  $region6: #{localization_network.5} parent=0 // loop_footer
    %s14 = sadd.s32 1, %s10
  $region7: #{localization_network.5} parent=0 // loop_footer_branch
    %9 = sbr.rel target = $region3
  $region8: #{localization_network.5} parent=0 // loop_exit
    _

// kernel: localization_network.6
$region0: #{localization_network.6}
  #allocation0 [shape = 'u32[]', space=smem, size = 0x4, offset = 0x4, fixed_abs, tag = 'smem constant byte address 0x4 - core index']
  #allocation1 [shape = 'u32[72,128]{1,0:T(1,128)}', space=vmem, size = 0x9000, scoped, tag = 'internal scratch']
  %s0 = inlined_call_operand.vmem [shape: bf16[2,16,288], index: 0, kind: input, shape index: {}]
  %s1 = inlined_call_operand.vmem [shape: bf16[288,64], index: 1, kind: input, shape index: {}]
  %s2 = inlined_call_operand.vmem [shape: f32[1,64], index: 2, kind: input, shape index: {}]
  %s3 = inlined_call_operand.vmem [shape: f32[1,64], index: 3, kind: input, shape index: {}]
  %s4 = inlined_call_operand.vmem [shape: f32[2,4,64], index: 4, kind: output, shape index: {}]
  %s5 = sld [smem:[#allocation0]]
  $region49: #{localization_network.6} parent=0
    _
  %s7 = ssub.s32 1, %s5
  %s8 = scalar_select 0, %s7, %s5
  loop: start=0, step=1, limit=4
  $region2: #{localization_network.6} parent=0 // loop_pre_header
    _
  $region3: #{localization_network.6} parent=0 // loop_header
    %s10 = sphi 0, %s14
    %p11 = scmp.ge.s32.totalorder %s10, 4
    %s20 = sphi 0, %s22
    %s23 = sphi 0, %s20
    %s24 = sphi 0, %s23
    %s40 = sphi 0, %s24
    %s44 = sphi 0, %s44
    %s46 = sphi 0, %s44
    %s47 = sphi 0, %s46
    %s61 = sphi 0, %s47
    %s65 = sphi 0, %s65
    %s67 = sphi 0, %s65
    %s68 = sphi 0, %s67
    %s82 = sphi 0, %s68
    %s86 = sphi 0, %s86
    %s88 = sphi 0, %s86
    %s89 = sphi 0, %s88
    %s103 = sphi 0, %s89
    %s109 = sphi 0, %s111
    %s112 = sphi 0, %s109
    %s113 = sphi 0, %s112
    %s129 = sphi 0, %s113
  $region4: #{localization_network.6} parent=0 // loop_header_branch
    %13 = sbr.rel (%p11) target = $region8
  $region5: #{localization_network.6} parent=0 // loop_body
    %s15 = ssub.s32 %s10, 1
    %s16 = ssub.s32 %s10, 2
    %s17 = sadd.s32 %s10, 1
    %s18 = ssub.s32 %s10, %s17
    %p19 = scmp.eq.s32.totalorder %s18, 0
    %s21 = sadd.s32 %s20, 1
    %s22 = scalar_select %p19, %s20, %s21
    %p25 = pneg %p19
    %p26 = scmp.eq.s32.totalorder %s10, 1
    %p27 = por %p25, %p26
    %p28 = scmp.ne.s32.totalorder %s20, %s23
    %p29 = scmp.eq.s32.totalorder %s10, 0
    %p30 = por %p28, %p29
    %p31 = scmp.ne.s32.totalorder %s20, %s23
    %p32 = scmp.eq.s32.totalorder %s15, 1
    %p33 = por %p31, %p32
    %p34 = scmp.ne.s32.totalorder %s23, %s24
    %p35 = scmp.eq.s32.totalorder %s15, 0
    %p36 = por %p34, %p35
    %p37 = scmp.ne.s32.totalorder %s23, %s24
    %p38 = scmp.eq.s32.totalorder %s16, 1
    %p39 = por %p37, %p38
    %p41 = scmp.ne.s32.totalorder %s24, %s40
    %p42 = scmp.eq.s32.totalorder %s16, 0
    %p43 = por %p41, %p42
    %s45 = sadd.s32 %s44, 1
    %p48 = scmp.eq.s32.totalorder %s10, 1
    %p49 = scmp.ne.s32.totalorder %s44, %s46
    %p50 = scmp.eq.s32.totalorder %s10, 0
    %p51 = por %p49, %p50
    %p52 = scmp.ne.s32.totalorder %s44, %s46
    %p53 = scmp.eq.s32.totalorder %s15, 1
    %p54 = por %p52, %p53
    %p55 = scmp.ne.s32.totalorder %s46, %s47
    %p56 = scmp.eq.s32.totalorder %s15, 0
    %p57 = por %p55, %p56
    %p58 = scmp.ne.s32.totalorder %s46, %s47
    %p59 = scmp.eq.s32.totalorder %s16, 1
    %p60 = por %p58, %p59
    %p62 = scmp.ne.s32.totalorder %s47, %s61
    %p63 = scmp.eq.s32.totalorder %s16, 0
    %p64 = por %p62, %p63
    %s66 = sadd.s32 %s65, 1
    %p69 = scmp.eq.s32.totalorder %s10, 1
    %p70 = scmp.ne.s32.totalorder %s65, %s67
    %p71 = scmp.eq.s32.totalorder %s10, 0
    %p72 = por %p70, %p71
    %p73 = scmp.ne.s32.totalorder %s65, %s67
    %p74 = scmp.eq.s32.totalorder %s15, 1
    %p75 = por %p73, %p74
    %p76 = scmp.ne.s32.totalorder %s67, %s68
    %p77 = scmp.eq.s32.totalorder %s15, 0
    %p78 = por %p76, %p77
    %p79 = scmp.ne.s32.totalorder %s67, %s68
    %p80 = scmp.eq.s32.totalorder %s16, 1
    %p81 = por %p79, %p80
    %p83 = scmp.ne.s32.totalorder %s68, %s82
    %p84 = scmp.eq.s32.totalorder %s16, 0
    %p85 = por %p83, %p84
    %s87 = sadd.s32 %s86, 1
    %p90 = scmp.eq.s32.totalorder %s10, 1
    %p91 = scmp.ne.s32.totalorder %s86, %s88
    %p92 = scmp.eq.s32.totalorder %s10, 0
    %p93 = por %p91, %p92
    %p94 = scmp.ne.s32.totalorder %s86, %s88
    %p95 = scmp.eq.s32.totalorder %s15, 1
    %p96 = por %p94, %p95
    %p97 = scmp.ne.s32.totalorder %s88, %s89
    %p98 = scmp.eq.s32.totalorder %s15, 0
    %p99 = por %p97, %p98
    %p100 = scmp.ne.s32.totalorder %s88, %s89
    %p101 = scmp.eq.s32.totalorder %s16, 1
    %p102 = por %p100, %p101
    %p104 = scmp.ne.s32.totalorder %s89, %s103
    %p105 = scmp.eq.s32.totalorder %s16, 0
    %p106 = por %p104, %p105
    %s107 = ssub.s32 %s10, %s17
    %p108 = scmp.eq.s32.totalorder %s107, 0
    %s110 = sadd.s32 %s109, 1
    %s111 = scalar_select %p108, %s109, %s110
    %p114 = pneg %p108
    %p115 = scmp.eq.s32.totalorder %s10, 1
    %p116 = por %p114, %p115
    %p117 = scmp.ne.s32.totalorder %s109, %s112
    %p118 = scmp.eq.s32.totalorder %s10, 0
    %p119 = por %p117, %p118
    %p120 = scmp.ne.s32.totalorder %s109, %s112
    %p121 = scmp.eq.s32.totalorder %s15, 1
    %p122 = por %p120, %p121
    %p123 = scmp.ne.s32.totalorder %s112, %s113
    %p124 = scmp.eq.s32.totalorder %s15, 0
    %p125 = por %p123, %p124
    %p126 = scmp.ne.s32.totalorder %s112, %s113
    %p127 = scmp.eq.s32.totalorder %s16, 1
    %p128 = por %p126, %p127
    %p130 = scmp.ne.s32.totalorder %s113, %s129
    %p131 = scmp.eq.s32.totalorder %s16, 0
    %p132 = por %p130, %p131
    %p133 = scmp.le.s32.totalorder 1, %s10
    %p134 = scmp.lt.s32.totalorder %s10, 3
    %p135 = pnand %p133, %p134
    %p136 = pneg %p135
    // Predicated region
    $region9: #{localization_network.6} parent=5 // pred_check
      _
    $region10: #{localization_network.6} parent=5 // pred_check_branch
      %138 = sbr.rel (%p135) target = $region12
    $region11: #{localization_network.6} parent=5 // pred_region
      %s139 = ssub.s32 %s10, 1
      // Predicated region
      $region13: #{localization_network.6} parent=11 // pred_check
        %p140 = pneg %p57
      $region14: #{localization_network.6} parent=11 // pred_check_branch
        %142 = sbr.rel (%p140) target = $region16
      $region15: #{localization_network.6} parent=11 // pred_region
        _
      $region16: #{localization_network.6} parent=11 // pred_fallthru
        _
      // Predicated region
      $region17: #{localization_network.6} parent=11 // pred_check
        %p143 = pneg %p78
      $region18: #{localization_network.6} parent=11 // pred_check_branch
        %145 = sbr.rel (%p143) target = $region20
      $region19: #{localization_network.6} parent=11 // pred_region
        _
      $region20: #{localization_network.6} parent=11 // pred_fallthru
        _
      // Predicated region
      $region21: #{localization_network.6} parent=11 // pred_check
        %p146 = pneg %p99
      $region22: #{localization_network.6} parent=11 // pred_check_branch
        %148 = sbr.rel (%p146) target = $region24
      $region23: #{localization_network.6} parent=11 // pred_region
        _
      $region24: #{localization_network.6} parent=11 // pred_fallthru
        _
    $region12: #{localization_network.6} parent=5 // pred_fallthru
      _
    %p149 = scmp.lt.s32.totalorder %s10, 2
    // Predicated region
    $region25: #{localization_network.6} parent=5 // pred_check
      %p150 = pneg %p149
    $region26: #{localization_network.6} parent=5 // pred_check_branch
      %152 = sbr.rel (%p150) target = $region28
    $region27: #{localization_network.6} parent=5 // pred_region
      // Predicated region
      $region29: #{localization_network.6} parent=27 // pred_check
        %p153 = pneg %p30
      $region30: #{localization_network.6} parent=27 // pred_check_branch
        %155 = sbr.rel (%p153) target = $region32
      $region31: #{localization_network.6} parent=27 // pred_region
        %p156 = scmp.lt.s32.totalorder %s10, 1
        %s157 = scalar_select %p156, %s10, 1
        %s158 = smul.addr %s157, 6
        %s159 = smul.addr %s158, 4
        %s160 = scalar_lea.vmem %s0, %s159
      $region32: #{localization_network.6} parent=27 // pred_fallthru
        _
    $region28: #{localization_network.6} parent=5 // pred_fallthru
      _
    %p161 = scmp.le.s32.totalorder 1, %s10
    %p162 = scmp.lt.s32.totalorder %s10, 3
    %p163 = pnand %p161, %p162
    %p164 = pneg %p163
    // Predicated region
    $region33: #{localization_network.6} parent=5 // pred_check
      _
    $region34: #{localization_network.6} parent=5 // pred_check_branch
      %166 = sbr.rel (%p163) target = $region36
    $region35: #{localization_network.6} parent=5 // pred_region
      %s167 = ssub.s32 %s10, 1
      %p168 = scmp.lt.s32.totalorder %s15, 1
      %s169 = scalar_select %p168, %s15, 1
      %s170 = smul.addr %s169, 6
      %s171 = smul.addr %s170, 4
      %s172 = scalar_lea.vmem %s0, %s171
      %p173 = pneg %p36
      %p174 = pneg %p33
      %p175 = pneg %p57
      %p176 = pneg %p54
      %p177 = pneg %p78
      %p178 = pneg %p75
      %p179 = pneg %p99
      %p180 = pneg %p96
      %p181 = pneg %p125
      %p182 = pneg %p122
      %p183 = scmp.lt.s32.totalorder %s15, 1
      %s184 = scalar_select %p183, %s15, 1
      %s185 = smul.addr %s184, 4
      %s186 = scalar_lea.vmem %s4, %s185
      %p187 = scmp.lt.s32.totalorder %s15, 1
      %s188 = scalar_select %p187, %s15, 1
      %s189 = smul.addr %s188, 6
      %s190 = smul.addr %s189, 4
      %s191 = scalar_lea.vmem %s0, %s190
      %p192 = scmp.lt.s32.totalorder %s15, 1
      %s193 = scalar_select %p192, %s15, 1
      %s194 = smul.addr %s193, 4
      %s195 = scalar_lea.vmem %s4, %s194
      %v197 = vld [vmem:[%s191] sm:$0xff]
      %v198 = vld [vmem:[%s191 + $0x8] sm:$0xf]
      %v199 = vld [vmem:[%s191 + $0xc] sm:$0xff]
      %v200 = vld [vmem:[%s191 + $0x14] sm:$0xf]
      %v201 = vld [vmem:[%s1] sm:$0xf]
      %v202 = vld [vmem:[%s1 + $0x4] sm:$0xf]
      %v203 = vld [vmem:[%s1 + $0x8] sm:$0xf]
      %v204 = vld [vmem:[%s1 + $0xc] sm:$0xf]
      %v205 = vld [vmem:[%s1 + $0x10] sm:$0xf]
      %v206 = vld [vmem:[%s1 + $0x14] sm:$0xf]
      %v207 = vld [vmem:[%s1 + $0x18] sm:$0xf]
      %v208 = vld [vmem:[%s1 + $0x1c] sm:$0xf]
      %v209 = vld [vmem:[%s1 + $0x20] sm:$0xf]
      %v210 = vld [vmem:[%s1 + $0x24] sm:$0xf]
      %v211 = vld [vmem:[%s1 + $0x28] sm:$0xf]
      %v212 = vld [vmem:[%s1 + $0x2c] sm:$0xf]
      %v213 = vld [vmem:[%s1 + $0x30] sm:$0xf]
      %v214 = vld [vmem:[%s1 + $0x34] sm:$0xf]
      %v215 = vld [vmem:[%s1 + $0x38] sm:$0xf]
      %v216 = vld [vmem:[%s1 + $0x3c] sm:$0xf]
      %v217 = vld [vmem:[%s1 + $0x40] sm:$0xf]
      %v218 = vld [vmem:[%s1 + $0x44] sm:$0xf]
      %v219 = vld [vmem:[%s1 + $0x48] sm:$0xf]
      %v220 = vld [vmem:[%s1 + $0x4c] sm:$0xf]
      %v221 = vld [vmem:[%s1 + $0x50] sm:$0xf]
      %v222 = vld [vmem:[%s1 + $0x54] sm:$0xf]
      %v223 = vld [vmem:[%s1 + $0x58] sm:$0xf]
      %v224 = vld [vmem:[%s1 + $0x5c] sm:$0xf]
      %v225 = vld [vmem:[%s1 + $0x60] sm:$0xf]
      %v226 = vld [vmem:[%s1 + $0x64] sm:$0xf]
      %v227 = vld [vmem:[%s1 + $0x68] sm:$0xf]
      %v228 = vld [vmem:[%s1 + $0x6c] sm:$0xf]
      %v229 = vld [vmem:[%s1 + $0x70] sm:$0xf]
      %v230 = vld [vmem:[%s1 + $0x74] sm:$0xf]
      %v231 = vld [vmem:[%s1 + $0x78] sm:$0xf]
      %v232 = vld [vmem:[%s1 + $0x7c] sm:$0xf]
      %v233 = vld [vmem:[%s1 + $0x80] sm:$0xf]
      %v234 = vld [vmem:[%s1 + $0x84] sm:$0xf]
      %v235 = vld [vmem:[%s1 + $0x88] sm:$0xf]
      %v236 = vld [vmem:[%s1 + $0x8c] sm:$0xf]
      %v241 = vunpack.c.l.b16 %v197
      %v242 = vunpack.c.h.b16 %v197
      %v243 = vunpack.c.l.b16 %v198
      %v244 = vunpack.c.l.b16 %v199
      %v245 = vunpack.c.h.b16 %v199
      %v246 = vunpack.c.l.b16 %v200
      %v247 = vpack.c.b16 %v244, %v241
      %v248 = vpack.c.b16 %v245, %v242
      %v249 = vpack.c.b16 %v246, %v243
      %v288 = vunpack.c.l.b16 %v201
      %v289 = vunpack.c.l.b16 %v202
      %v290 = vunpack.c.l.b16 %v203
      %v291 = vunpack.c.l.b16 %v204
      %v292 = vunpack.c.l.b16 %v205
      %v293 = vunpack.c.l.b16 %v206
      %v294 = vunpack.c.l.b16 %v207
      %v295 = vunpack.c.l.b16 %v208
      %v296 = vunpack.c.l.b16 %v209
      %v297 = vunpack.c.l.b16 %v210
      %v298 = vunpack.c.l.b16 %v211
      %v299 = vunpack.c.l.b16 %v212
      %v300 = vunpack.c.l.b16 %v213
      %v301 = vunpack.c.l.b16 %v214
      %v302 = vunpack.c.l.b16 %v215
      %v303 = vunpack.c.l.b16 %v216
      %v304 = vunpack.c.l.b16 %v217
      %v305 = vunpack.c.l.b16 %v218
      %v306 = vunpack.c.l.b16 %v219
      %v307 = vunpack.c.l.b16 %v220
      %v308 = vunpack.c.l.b16 %v221
      %v309 = vunpack.c.l.b16 %v222
      %v310 = vunpack.c.l.b16 %v223
      %v311 = vunpack.c.l.b16 %v224
      %v312 = vunpack.c.l.b16 %v225
      %v313 = vunpack.c.l.b16 %v226
      %v314 = vunpack.c.l.b16 %v227
      %v315 = vunpack.c.l.b16 %v228
      %v316 = vunpack.c.l.b16 %v229
      %v317 = vunpack.c.l.b16 %v230
      %v318 = vunpack.c.l.b16 %v231
      %v319 = vunpack.c.l.b16 %v232
      %v320 = vunpack.c.l.b16 %v233
      %v321 = vunpack.c.l.b16 %v234
      %v322 = vunpack.c.l.b16 %v235
      %v323 = vunpack.c.l.b16 %v236
      %v324 = vpack.c.b16 %v289, %v288
      %v325 = vpack.c.b16 %v291, %v290
      %v326 = vpack.c.b16 %v293, %v292
      %v327 = vpack.c.b16 %v295, %v294
      %v328 = vpack.c.b16 %v297, %v296
      %v329 = vpack.c.b16 %v299, %v298
      %v330 = vpack.c.b16 %v301, %v300
      %v331 = vpack.c.b16 %v303, %v302
      %v332 = vpack.c.b16 %v305, %v304
      %v333 = vpack.c.b16 %v307, %v306
      %v334 = vpack.c.b16 %v309, %v308
      %v335 = vpack.c.b16 %v311, %v310
      %v336 = vpack.c.b16 %v313, %v312
      %v337 = vpack.c.b16 %v315, %v314
      %v338 = vpack.c.b16 %v317, %v316
      %v339 = vpack.c.b16 %v319, %v318
      %v340 = vpack.c.b16 %v321, %v320
      %v341 = vpack.c.b16 %v323, %v322
      %vm360 = vcmask 261120
      %v362 = vsel %vm360, %v249, 0
      %364 = vmatpush.bf16.msra.mxu0 %v331
      %365 = vmatpush.bf16.msra.mxu0 %v330
      %366 = vmatpush.bf16.msra.mxu0 %v329
      %367 = vmatpush.bf16.msra.mxu0 %v328
      %368 = vmatpush.bf16.msra.mxu0 %v327
      %369 = vmatpush.bf16.msra.mxu0 %v326
      %370 = vmatpush.bf16.msra.mxu0 %v325
      %371 = vmatpush.bf16.msra.mxu0 %v324
      %372 = vmatmul.bf16.gmra.mxu0 %v247
      %v373 = vpop.f32.mrf.mxu0
      %v374 = vadd.f32 0.0, %v373
      %v375 = vpop.f32.mrf.mxu0
      %v376 = vadd.f32 0.0, %v375
      %377 = vdwg.mxu0
      %378 = vmatpush.bf16.msra.mxu0 %v339
      %379 = vmatpush.bf16.msra.mxu0 %v338
      %380 = vmatpush.bf16.msra.mxu0 %v337
      %381 = vmatpush.bf16.msra.mxu0 %v336
      %382 = vmatpush.bf16.msra.mxu0 %v335
      %383 = vmatpush.bf16.msra.mxu0 %v334
      %384 = vmatpush.bf16.msra.mxu0 %v333
      %385 = vmatpush.bf16.msra.mxu0 %v332
      %386 = vmatmul.bf16.gmra.mxu0 %v248
      %v387 = vpop.f32.mrf.mxu0
      %v388 = vadd.f32 %v374, %v387
      %v389 = vpop.f32.mrf.mxu0
      %v390 = vadd.f32 %v376, %v389
      %391 = vdwg.mxu0
      %392 = vmatpush.bf16.msra.mxu0 0
      %393 = vmatpush.bf16.msra.mxu0 0
      %394 = vmatpush.bf16.msra.mxu0 0
      %395 = vmatpush.bf16.msra.mxu0 0
      %396 = vmatpush.bf16.msra.mxu0 0
      %397 = vmatpush.bf16.msra.mxu0 0
      %398 = vmatpush.bf16.msra.mxu0 %v341
      %399 = vmatpush.bf16.msra.mxu0 %v340
      %400 = vmatmul.bf16.gmra.mxu0 %v362
      %v401 = vpop.f32.mrf.mxu0
      %v402 = vadd.f32 %v388, %v401
      %v403 = vpop.f32.mrf.mxu0
      %v404 = vadd.f32 %v390, %v403
      %405 = vdwg.mxu0
      %v406 = vld [vmem:[%s2] sm:$0x1]
      %v408 = vperm.slane %v406, 0
      %v410 = vmul.f32 %v402, %v408
      %v411 = vmul.f32 %v404, %v408
      %v412 = vld [vmem:[%s3] sm:$0x1]
      %v414 = vperm.slane %v412, 0
      %v416 = vadd.f32 %v410, %v414
      %v417 = vadd.f32 %v411, %v414
      %v418 = vmax.f32 %v416, 0.0
      %v419 = vmax.f32 %v417, 0.0
      %v421 = vrot.slane %v418, 4
      %v423 = vmax.f32 %v418, %v421
      %v425 = vrot.slane %v419, 4
      %v427 = vmax.f32 %v419, %v425
      %v428 = vmax.f32 %v423, %v427
      %vm429 = vcmask 519168
      %430 = vst.msk [vmem:[%s195] sm:$0xf] %vm429, %v428
      %p431 = scmp.lt.s32.totalorder %s15, 1
      %s432 = scalar_select %p431, %s15, 1
      %s433 = smul.addr %s432, 4
      %s434 = scalar_lea.vmem %s4, %s433
      // Predicated region
      $region37: #{localization_network.6} parent=35 // pred_check
        %p435 = pneg %p122
      $region38: #{localization_network.6} parent=35 // pred_check_branch
        %437 = sbr.rel (%p435) target = $region40
      $region39: #{localization_network.6} parent=35 // pred_region
        _
      $region40: #{localization_network.6} parent=35 // pred_fallthru
        _
    $region36: #{localization_network.6} parent=5 // pred_fallthru
      _
    %p438 = scmp.le.s32.totalorder 2, %s10
    // Predicated region
    $region41: #{localization_network.6} parent=5 // pred_check
      %p439 = pneg %p438
    $region42: #{localization_network.6} parent=5 // pred_check_branch
      %441 = sbr.rel (%p439) target = $region44
    $region43: #{localization_network.6} parent=5 // pred_region
      %s442 = ssub.s32 %s10, 2
      // Predicated region
      $region45: #{localization_network.6} parent=43 // pred_check
        %p443 = pneg %p128
      $region46: #{localization_network.6} parent=43 // pred_check_branch
        %445 = sbr.rel (%p443) target = $region48
      $region47: #{localization_network.6} parent=43 // pred_region
        %p446 = scmp.lt.s32.totalorder %s16, 1
        %s447 = scalar_select %p446, %s16, 1
        %s448 = smul.addr %s447, 4
        %s449 = scalar_lea.vmem %s4, %s448
      $region48: #{localization_network.6} parent=43 // pred_fallthru
        _
    $region44: #{localization_network.6} parent=5 // pred_fallthru
      _
  $region6: #{localization_network.6} parent=0 // loop_footer
    %s14 = sadd.s32 1, %s10
  $region7: #{localization_network.6} parent=0 // loop_footer_branch
    %9 = sbr.rel target = $region3
  $region8: #{localization_network.6} parent=0 // loop_exit
    _

// kernel: localization_network.7
$region0: #{localization_network.7}
  #allocation0 [shape = 'u32[]', space=smem, size = 0x4, offset = 0x4, fixed_abs, tag = 'smem constant byte address 0x4 - core index']
  #allocation1 [shape = 'u32[72,128]{1,0:T(1,128)}', space=vmem, size = 0x9000, scoped, tag = 'internal scratch']
  %s0 = inlined_call_operand.vmem [shape: bf16[2,4,576], index: 0, kind: input, shape index: {}]
  %s1 = inlined_call_operand.vmem [shape: bf16[576,128], index: 1, kind: input, shape index: {}]
  %s2 = inlined_call_operand.vmem [shape: f32[1,128], index: 2, kind: input, shape index: {}]
  %s3 = inlined_call_operand.vmem [shape: f32[1,128], index: 3, kind: input, shape index: {}]
  %s4 = inlined_call_operand.vmem [shape: bf16[128,64], index: 4, kind: input, shape index: {}]
  %s5 = inlined_call_operand.vmem [shape: f32[1,64], index: 5, kind: input, shape index: {}]
  %s6 = inlined_call_operand.vmem [shape: bf16[64,40], index: 6, kind: input, shape index: {}]
  %s7 = inlined_call_operand.vmem [shape: f32[1,40], index: 7, kind: input, shape index: {}]
  %s8 = inlined_call_operand.vmem [shape: f32[2,1,40], index: 8, kind: output, shape index: {}]
  %s9 = sld [smem:[#allocation0]]
  $region65: #{localization_network.7} parent=0
    _
  %s11 = ssub.s32 1, %s9
  %s12 = scalar_select 0, %s11, %s9
  loop: start=0, step=1, limit=4
  $region2: #{localization_network.7} parent=0 // loop_pre_header
    _
  $region3: #{localization_network.7} parent=0 // loop_header
    %s14 = sphi 0, %s18
    %p15 = scmp.ge.s32.totalorder %s14, 4
    %s24 = sphi 0, %s26
    %s27 = sphi 0, %s24
    %s28 = sphi 0, %s27
    %s44 = sphi 0, %s28
    %s48 = sphi 0, %s48
    %s50 = sphi 0, %s48
    %s51 = sphi 0, %s50
    %s65 = sphi 0, %s51
    %s69 = sphi 0, %s69
    %s71 = sphi 0, %s69
    %s72 = sphi 0, %s71
    %s86 = sphi 0, %s72
    %s90 = sphi 0, %s90
    %s92 = sphi 0, %s90
    %s93 = sphi 0, %s92
    %s107 = sphi 0, %s93
    %s111 = sphi 0, %s111
    %s113 = sphi 0, %s111
    %s114 = sphi 0, %s113
    %s128 = sphi 0, %s114
    %s132 = sphi 0, %s132
    %s134 = sphi 0, %s132
    %s135 = sphi 0, %s134
    %s149 = sphi 0, %s135
    %s153 = sphi 0, %s153
    %s155 = sphi 0, %s153
    %s156 = sphi 0, %s155
    %s170 = sphi 0, %s156
    %s174 = sphi 0, %s174
    %s176 = sphi 0, %s174
    %s177 = sphi 0, %s176
    %s191 = sphi 0, %s177
    %s197 = sphi 0, %s199
    %s200 = sphi 0, %s197
    %s201 = sphi 0, %s200
    %s217 = sphi 0, %s201
  $region4: #{localization_network.7} parent=0 // loop_header_branch
    %17 = sbr.rel (%p15) target = $region8
  $region5: #{localization_network.7} parent=0 // loop_body
    %s19 = ssub.s32 %s14, 1
    %s20 = ssub.s32 %s14, 2
    %s21 = sadd.s32 %s14, 1
    %s22 = ssub.s32 %s14, %s21
    %p23 = scmp.eq.s32.totalorder %s22, 0
    %s25 = sadd.s32 %s24, 1
    %s26 = scalar_select %p23, %s24, %s25
    %p29 = pneg %p23
    %p30 = scmp.eq.s32.totalorder %s14, 1
    %p31 = por %p29, %p30
    %p32 = scmp.ne.s32.totalorder %s24, %s27
    %p33 = scmp.eq.s32.totalorder %s14, 0
    %p34 = por %p32, %p33
    %p35 = scmp.ne.s32.totalorder %s24, %s27
    %p36 = scmp.eq.s32.totalorder %s19, 1
    %p37 = por %p35, %p36
    %p38 = scmp.ne.s32.totalorder %s27, %s28
    %p39 = scmp.eq.s32.totalorder %s19, 0
    %p40 = por %p38, %p39
    %p41 = scmp.ne.s32.totalorder %s27, %s28
    %p42 = scmp.eq.s32.totalorder %s20, 1
    %p43 = por %p41, %p42
    %p45 = scmp.ne.s32.totalorder %s28, %s44
    %p46 = scmp.eq.s32.totalorder %s20, 0
    %p47 = por %p45, %p46
    %s49 = sadd.s32 %s48, 1
    %p52 = scmp.eq.s32.totalorder %s14, 1
    %p53 = scmp.ne.s32.totalorder %s48, %s50
    %p54 = scmp.eq.s32.totalorder %s14, 0
    %p55 = por %p53, %p54
    %p56 = scmp.ne.s32.totalorder %s48, %s50
    %p57 = scmp.eq.s32.totalorder %s19, 1
    %p58 = por %p56, %p57
    %p59 = scmp.ne.s32.totalorder %s50, %s51
    %p60 = scmp.eq.s32.totalorder %s19, 0
    %p61 = por %p59, %p60
    %p62 = scmp.ne.s32.totalorder %s50, %s51
    %p63 = scmp.eq.s32.totalorder %s20, 1
    %p64 = por %p62, %p63
    %p66 = scmp.ne.s32.totalorder %s51, %s65
    %p67 = scmp.eq.s32.totalorder %s20, 0
    %p68 = por %p66, %p67
    %s70 = sadd.s32 %s69, 1
    %p73 = scmp.eq.s32.totalorder %s14, 1
    %p74 = scmp.ne.s32.totalorder %s69, %s71
    %p75 = scmp.eq.s32.totalorder %s14, 0
    %p76 = por %p74, %p75
    %p77 = scmp.ne.s32.totalorder %s69, %s71
    %p78 = scmp.eq.s32.totalorder %s19, 1
    %p79 = por %p77, %p78
    %p80 = scmp.ne.s32.totalorder %s71, %s72
    %p81 = scmp.eq.s32.totalorder %s19, 0
    %p82 = por %p80, %p81
    %p83 = scmp.ne.s32.totalorder %s71, %s72
    %p84 = scmp.eq.s32.totalorder %s20, 1
    %p85 = por %p83, %p84
    %p87 = scmp.ne.s32.totalorder %s72, %s86
    %p88 = scmp.eq.s32.totalorder %s20, 0
    %p89 = por %p87, %p88
    %s91 = sadd.s32 %s90, 1
    %p94 = scmp.eq.s32.totalorder %s14, 1
    %p95 = scmp.ne.s32.totalorder %s90, %s92
    %p96 = scmp.eq.s32.totalorder %s14, 0
    %p97 = por %p95, %p96
    %p98 = scmp.ne.s32.totalorder %s90, %s92
    %p99 = scmp.eq.s32.totalorder %s19, 1
    %p100 = por %p98, %p99
    %p101 = scmp.ne.s32.totalorder %s92, %s93
    %p102 = scmp.eq.s32.totalorder %s19, 0
    %p103 = por %p101, %p102
    %p104 = scmp.ne.s32.totalorder %s92, %s93
    %p105 = scmp.eq.s32.totalorder %s20, 1
    %p106 = por %p104, %p105
    %p108 = scmp.ne.s32.totalorder %s93, %s107
    %p109 = scmp.eq.s32.totalorder %s20, 0
    %p110 = por %p108, %p109
    %s112 = sadd.s32 %s111, 1
    %p115 = scmp.eq.s32.totalorder %s14, 1
    %p116 = scmp.ne.s32.totalorder %s111, %s113
    %p117 = scmp.eq.s32.totalorder %s14, 0
    %p118 = por %p116, %p117
    %p119 = scmp.ne.s32.totalorder %s111, %s113
    %p120 = scmp.eq.s32.totalorder %s19, 1
    %p121 = por %p119, %p120
    %p122 = scmp.ne.s32.totalorder %s113, %s114
    %p123 = scmp.eq.s32.totalorder %s19, 0
    %p124 = por %p122, %p123
    %p125 = scmp.ne.s32.totalorder %s113, %s114
    %p126 = scmp.eq.s32.totalorder %s20, 1
    %p127 = por %p125, %p126
    %p129 = scmp.ne.s32.totalorder %s114, %s128
    %p130 = scmp.eq.s32.totalorder %s20, 0
    %p131 = por %p129, %p130
    %s133 = sadd.s32 %s132, 1
    %p136 = scmp.eq.s32.totalorder %s14, 1
    %p137 = scmp.ne.s32.totalorder %s132, %s134
    %p138 = scmp.eq.s32.totalorder %s14, 0
    %p139 = por %p137, %p138
    %p140 = scmp.ne.s32.totalorder %s132, %s134
    %p141 = scmp.eq.s32.totalorder %s19, 1
    %p142 = por %p140, %p141
    %p143 = scmp.ne.s32.totalorder %s134, %s135
    %p144 = scmp.eq.s32.totalorder %s19, 0
    %p145 = por %p143, %p144
    %p146 = scmp.ne.s32.totalorder %s134, %s135
    %p147 = scmp.eq.s32.totalorder %s20, 1
    %p148 = por %p146, %p147
    %p150 = scmp.ne.s32.totalorder %s135, %s149
    %p151 = scmp.eq.s32.totalorder %s20, 0
    %p152 = por %p150, %p151
    %s154 = sadd.s32 %s153, 1
    %p157 = scmp.eq.s32.totalorder %s14, 1
    %p158 = scmp.ne.s32.totalorder %s153, %s155
    %p159 = scmp.eq.s32.totalorder %s14, 0
    %p160 = por %p158, %p159
    %p161 = scmp.ne.s32.totalorder %s153, %s155
    %p162 = scmp.eq.s32.totalorder %s19, 1
    %p163 = por %p161, %p162
    %p164 = scmp.ne.s32.totalorder %s155, %s156
    %p165 = scmp.eq.s32.totalorder %s19, 0
    %p166 = por %p164, %p165
    %p167 = scmp.ne.s32.totalorder %s155, %s156
    %p168 = scmp.eq.s32.totalorder %s20, 1
    %p169 = por %p167, %p168
    %p171 = scmp.ne.s32.totalorder %s156, %s170
    %p172 = scmp.eq.s32.totalorder %s20, 0
    %p173 = por %p171, %p172
    %s175 = sadd.s32 %s174, 1
    %p178 = scmp.eq.s32.totalorder %s14, 1
    %p179 = scmp.ne.s32.totalorder %s174, %s176
    %p180 = scmp.eq.s32.totalorder %s14, 0
    %p181 = por %p179, %p180
    %p182 = scmp.ne.s32.totalorder %s174, %s176
    %p183 = scmp.eq.s32.totalorder %s19, 1
    %p184 = por %p182, %p183
    %p185 = scmp.ne.s32.totalorder %s176, %s177
    %p186 = scmp.eq.s32.totalorder %s19, 0
    %p187 = por %p185, %p186
    %p188 = scmp.ne.s32.totalorder %s176, %s177
    %p189 = scmp.eq.s32.totalorder %s20, 1
    %p190 = por %p188, %p189
    %p192 = scmp.ne.s32.totalorder %s177, %s191
    %p193 = scmp.eq.s32.totalorder %s20, 0
    %p194 = por %p192, %p193
    %s195 = ssub.s32 %s14, %s21
    %p196 = scmp.eq.s32.totalorder %s195, 0
    %s198 = sadd.s32 %s197, 1
    %s199 = scalar_select %p196, %s197, %s198
    %p202 = pneg %p196
    %p203 = scmp.eq.s32.totalorder %s14, 1
    %p204 = por %p202, %p203
    %p205 = scmp.ne.s32.totalorder %s197, %s200
    %p206 = scmp.eq.s32.totalorder %s14, 0
    %p207 = por %p205, %p206
    %p208 = scmp.ne.s32.totalorder %s197, %s200
    %p209 = scmp.eq.s32.totalorder %s19, 1
    %p210 = por %p208, %p209
    %p211 = scmp.ne.s32.totalorder %s200, %s201
    %p212 = scmp.eq.s32.totalorder %s19, 0
    %p213 = por %p211, %p212
    %p214 = scmp.ne.s32.totalorder %s200, %s201
    %p215 = scmp.eq.s32.totalorder %s20, 1
    %p216 = por %p214, %p215
    %p218 = scmp.ne.s32.totalorder %s201, %s217
    %p219 = scmp.eq.s32.totalorder %s20, 0
    %p220 = por %p218, %p219
    %p221 = scmp.le.s32.totalorder 1, %s14
    %p222 = scmp.lt.s32.totalorder %s14, 3
    %p223 = pnand %p221, %p222
    %p224 = pneg %p223
    // Predicated region
    $region9: #{localization_network.7} parent=5 // pred_check
      _
    $region10: #{localization_network.7} parent=5 // pred_check_branch
      %226 = sbr.rel (%p223) target = $region12
    $region11: #{localization_network.7} parent=5 // pred_region
      %s227 = ssub.s32 %s14, 1
      // Predicated region
      $region13: #{localization_network.7} parent=11 // pred_check
        %p228 = pneg %p61
      $region14: #{localization_network.7} parent=11 // pred_check_branch
        %230 = sbr.rel (%p228) target = $region16
      $region15: #{localization_network.7} parent=11 // pred_region
        _
      $region16: #{localization_network.7} parent=11 // pred_fallthru
        _
      // Predicated region
      $region17: #{localization_network.7} parent=11 // pred_check
        %p231 = pneg %p82
      $region18: #{localization_network.7} parent=11 // pred_check_branch
        %233 = sbr.rel (%p231) target = $region20
      $region19: #{localization_network.7} parent=11 // pred_region
        _
      $region20: #{localization_network.7} parent=11 // pred_fallthru
        _
      // Predicated region
      $region21: #{localization_network.7} parent=11 // pred_check
        %p234 = pneg %p103
      $region22: #{localization_network.7} parent=11 // pred_check_branch
        %236 = sbr.rel (%p234) target = $region24
      $region23: #{localization_network.7} parent=11 // pred_region
        _
      $region24: #{localization_network.7} parent=11 // pred_fallthru
        _
      // Predicated region
      $region25: #{localization_network.7} parent=11 // pred_check
        %p237 = pneg %p124
      $region26: #{localization_network.7} parent=11 // pred_check_branch
        %239 = sbr.rel (%p237) target = $region28
      $region27: #{localization_network.7} parent=11 // pred_region
        _
      $region28: #{localization_network.7} parent=11 // pred_fallthru
        _
      // Predicated region
      $region29: #{localization_network.7} parent=11 // pred_check
        %p240 = pneg %p145
      $region30: #{localization_network.7} parent=11 // pred_check_branch
        %242 = sbr.rel (%p240) target = $region32
      $region31: #{localization_network.7} parent=11 // pred_region
        _
      $region32: #{localization_network.7} parent=11 // pred_fallthru
        _
      // Predicated region
      $region33: #{localization_network.7} parent=11 // pred_check
        %p243 = pneg %p166
      $region34: #{localization_network.7} parent=11 // pred_check_branch
        %245 = sbr.rel (%p243) target = $region36
      $region35: #{localization_network.7} parent=11 // pred_region
        _
      $region36: #{localization_network.7} parent=11 // pred_fallthru
        _
      // Predicated region
      $region37: #{localization_network.7} parent=11 // pred_check
        %p246 = pneg %p187
      $region38: #{localization_network.7} parent=11 // pred_check_branch
        %248 = sbr.rel (%p246) target = $region40
      $region39: #{localization_network.7} parent=11 // pred_region
        _
      $region40: #{localization_network.7} parent=11 // pred_fallthru
        _
    $region12: #{localization_network.7} parent=5 // pred_fallthru
      _
    %p249 = scmp.lt.s32.totalorder %s14, 2
    // Predicated region
    $region41: #{localization_network.7} parent=5 // pred_check
      %p250 = pneg %p249
    $region42: #{localization_network.7} parent=5 // pred_check_branch
      %252 = sbr.rel (%p250) target = $region44
    $region43: #{localization_network.7} parent=5 // pred_region
      // Predicated region
      $region45: #{localization_network.7} parent=43 // pred_check
        %p253 = pneg %p34
      $region46: #{localization_network.7} parent=43 // pred_check_branch
        %255 = sbr.rel (%p253) target = $region48
      $region47: #{localization_network.7} parent=43 // pred_region
        %p256 = scmp.lt.s32.totalorder %s14, 1
        %s257 = scalar_select %p256, %s14, 1
        %s258 = smul.addr %s257, 5
        %s259 = smul.addr %s258, 2
        %s260 = scalar_lea.vmem %s0, %s259
      $region48: #{localization_network.7} parent=43 // pred_fallthru
        _
    $region44: #{localization_network.7} parent=5 // pred_fallthru
      _
    %p261 = scmp.le.s32.totalorder 1, %s14
    %p262 = scmp.lt.s32.totalorder %s14, 3
    %p263 = pnand %p261, %p262
    %p264 = pneg %p263
    // Predicated region
    $region49: #{localization_network.7} parent=5 // pred_check
      _
    $region50: #{localization_network.7} parent=5 // pred_check_branch
      %266 = sbr.rel (%p263) target = $region52
    $region51: #{localization_network.7} parent=5 // pred_region
      %s267 = ssub.s32 %s14, 1
      %p268 = scmp.lt.s32.totalorder %s19, 1
      %s269 = scalar_select %p268, %s19, 1
      %s270 = smul.addr %s269, 5
      %s271 = smul.addr %s270, 2
      %s272 = scalar_lea.vmem %s0, %s271
      %p273 = pneg %p40
      %p274 = pneg %p37
      %p275 = pneg %p61
      %p276 = pneg %p58
      %p277 = pneg %p82
      %p278 = pneg %p79
      %p279 = pneg %p103
      %p280 = pneg %p100
      %p281 = pneg %p124
      %p282 = pneg %p121
      %p283 = pneg %p145
      %p284 = pneg %p142
      %p285 = pneg %p166
      %p286 = pneg %p163
      %p287 = pneg %p187
      %p288 = pneg %p184
      %p289 = pneg %p213
      %p290 = pneg %p210
      %p291 = scmp.lt.s32.totalorder %s19, 1
      %s292 = scalar_select %p291, %s19, 1
      %s293 = scalar_lea.vmem %s8, %s292
      %p294 = scmp.lt.s32.totalorder %s19, 1
      %s295 = scalar_select %p294, %s19, 1
      %s296 = smul.addr %s295, 5
      %s297 = smul.addr %s296, 2
      %s298 = scalar_lea.vmem %s0, %s297
      %p299 = scmp.lt.s32.totalorder %s19, 1
      %s300 = scalar_select %p299, %s19, 1
      %s301 = scalar_lea.vmem %s8, %s300
      %v303 = vld [vmem:[%s298] sm:$0xff]
      %v304 = vld [vmem:[%s298 + $0x8] sm:$0x3]
      %v305 = vld [vmem:[%s1] sm:$0xf]
      %v306 = vld [vmem:[%s1 + $0x4] sm:$0xf]
      %v307 = vld [vmem:[%s1 + $0x8] sm:$0xf]
      %v308 = vld [vmem:[%s1 + $0xc] sm:$0xf]
      %v309 = vld [vmem:[%s1 + $0x10] sm:$0xf]
      %v310 = vld [vmem:[%s1 + $0x14] sm:$0xf]
      %v311 = vld [vmem:[%s1 + $0x18] sm:$0xf]
      %v312 = vld [vmem:[%s1 + $0x1c] sm:$0xf]
      %v313 = vld [vmem:[%s1 + $0x20] sm:$0xf]
      %v314 = vld [vmem:[%s1 + $0x24] sm:$0xf]
      %v315 = vld [vmem:[%s1 + $0x28] sm:$0xf]
      %v316 = vld [vmem:[%s1 + $0x2c] sm:$0xf]
      %v317 = vld [vmem:[%s1 + $0x30] sm:$0xf]
      %v318 = vld [vmem:[%s1 + $0x34] sm:$0xf]
      %v319 = vld [vmem:[%s1 + $0x38] sm:$0xf]
      %v320 = vld [vmem:[%s1 + $0x3c] sm:$0xf]
      %v321 = vld [vmem:[%s1 + $0x40] sm:$0xf]
      %v322 = vld [vmem:[%s1 + $0x44] sm:$0xf]
      %v323 = vld [vmem:[%s1 + $0x48] sm:$0xf]
      %v324 = vld [vmem:[%s1 + $0x4c] sm:$0xf]
      %v325 = vld [vmem:[%s1 + $0x50] sm:$0xf]
      %v326 = vld [vmem:[%s1 + $0x54] sm:$0xf]
      %v327 = vld [vmem:[%s1 + $0x58] sm:$0xf]
      %v328 = vld [vmem:[%s1 + $0x5c] sm:$0xf]
      %v329 = vld [vmem:[%s1 + $0x60] sm:$0xf]
      %v330 = vld [vmem:[%s1 + $0x64] sm:$0xf]
      %v331 = vld [vmem:[%s1 + $0x68] sm:$0xf]
      %v332 = vld [vmem:[%s1 + $0x6c] sm:$0xf]
      %v333 = vld [vmem:[%s1 + $0x70] sm:$0xf]
      %v334 = vld [vmem:[%s1 + $0x74] sm:$0xf]
      %v335 = vld [vmem:[%s1 + $0x78] sm:$0xf]
      %v336 = vld [vmem:[%s1 + $0x7c] sm:$0xf]
      %v337 = vld [vmem:[%s1 + $0x80] sm:$0xf]
      %v338 = vld [vmem:[%s1 + $0x84] sm:$0xf]
      %v339 = vld [vmem:[%s1 + $0x88] sm:$0xf]
      %v340 = vld [vmem:[%s1 + $0x8c] sm:$0xf]
      %v341 = vld [vmem:[%s1 + $0x90] sm:$0xf]
      %v342 = vld [vmem:[%s1 + $0x94] sm:$0xf]
      %v343 = vld [vmem:[%s1 + $0x98] sm:$0xf]
      %v344 = vld [vmem:[%s1 + $0x9c] sm:$0xf]
      %v345 = vld [vmem:[%s1 + $0xa0] sm:$0xf]
      %v346 = vld [vmem:[%s1 + $0xa4] sm:$0xf]
      %v347 = vld [vmem:[%s1 + $0xa8] sm:$0xf]
      %v348 = vld [vmem:[%s1 + $0xac] sm:$0xf]
      %v349 = vld [vmem:[%s1 + $0xb0] sm:$0xf]
      %v350 = vld [vmem:[%s1 + $0xb4] sm:$0xf]
      %v351 = vld [vmem:[%s1 + $0xb8] sm:$0xf]
      %v352 = vld [vmem:[%s1 + $0xbc] sm:$0xf]
      %v353 = vld [vmem:[%s1 + $0xc0] sm:$0xf]
      %v354 = vld [vmem:[%s1 + $0xc4] sm:$0xf]
      %v355 = vld [vmem:[%s1 + $0xc8] sm:$0xf]
      %v356 = vld [vmem:[%s1 + $0xcc] sm:$0xf]
      %v357 = vld [vmem:[%s1 + $0xd0] sm:$0xf]
      %v358 = vld [vmem:[%s1 + $0xd4] sm:$0xf]
      %v359 = vld [vmem:[%s1 + $0xd8] sm:$0xf]
      %v360 = vld [vmem:[%s1 + $0xdc] sm:$0xf]
      %v361 = vld [vmem:[%s1 + $0xe0] sm:$0xf]
      %v362 = vld [vmem:[%s1 + $0xe4] sm:$0xf]
      %v363 = vld [vmem:[%s1 + $0xe8] sm:$0xf]
      %v364 = vld [vmem:[%s1 + $0xec] sm:$0xf]
      %v365 = vld [vmem:[%s1 + $0xf0] sm:$0xf]
      %v366 = vld [vmem:[%s1 + $0xf4] sm:$0xf]
      %v367 = vld [vmem:[%s1 + $0xf8] sm:$0xf]
      %v368 = vld [vmem:[%s1 + $0xfc] sm:$0xf]
      %v369 = vld [vmem:[%s1 + $0x100] sm:$0xf]
      %v370 = vld [vmem:[%s1 + $0x104] sm:$0xf]
      %v371 = vld [vmem:[%s1 + $0x108] sm:$0xf]
      %v372 = vld [vmem:[%s1 + $0x10c] sm:$0xf]
      %v373 = vld [vmem:[%s1 + $0x110] sm:$0xf]
      %v374 = vld [vmem:[%s1 + $0x114] sm:$0xf]
      %v375 = vld [vmem:[%s1 + $0x118] sm:$0xf]
      %v376 = vld [vmem:[%s1 + $0x11c] sm:$0xf]
      %378 = vst [vmem:[#allocation1] ss:$4 sm:$0xff] %v303
      %s380 = scalar_lea.vmem [#allocation1], 32
      %381 = vst [vmem:[%s380] ss:$4 sm:$0xff] %v304
      %v382 = vld.sshfl [vmem:[#allocation1] sm:$0xff pattern:$0x73625140]
      %v383 = vld.sshfl [vmem:[#allocation1 + $0x8] sm:$0xff pattern:$0x73625140]
      %v384 = vld.sshfl [vmem:[#allocation1 + $0x10] sm:$0xff pattern:$0x73625140]
      %v385 = vld.sshfl [vmem:[#allocation1 + $0x18] sm:$0xff pattern:$0x73625140]
      %v386 = vld.sshfl [vmem:[#allocation1 + $0x20] sm:$0xff pattern:$0x73625140]
      %v463 = vunpack.c.l.b16 %v305
      %v464 = vunpack.c.l.b16 %v306
      %v465 = vunpack.c.l.b16 %v307
      %v466 = vunpack.c.l.b16 %v308
      %v467 = vunpack.c.l.b16 %v309
      %v468 = vunpack.c.l.b16 %v310
      %v469 = vunpack.c.l.b16 %v311
      %v470 = vunpack.c.l.b16 %v312
      %v471 = vunpack.c.l.b16 %v313
      %v472 = vunpack.c.l.b16 %v314
      %v473 = vunpack.c.l.b16 %v315
      %v474 = vunpack.c.l.b16 %v316
      %v475 = vunpack.c.l.b16 %v317
      %v476 = vunpack.c.l.b16 %v318
      %v477 = vunpack.c.l.b16 %v319
      %v478 = vunpack.c.l.b16 %v320
      %v479 = vunpack.c.l.b16 %v321
      %v480 = vunpack.c.l.b16 %v322
      %v481 = vunpack.c.l.b16 %v323
      %v482 = vunpack.c.l.b16 %v324
      %v483 = vunpack.c.l.b16 %v325
      %v484 = vunpack.c.l.b16 %v326
      %v485 = vunpack.c.l.b16 %v327
      %v486 = vunpack.c.l.b16 %v328
      %v487 = vunpack.c.l.b16 %v329
      %v488 = vunpack.c.l.b16 %v330
      %v489 = vunpack.c.l.b16 %v331
      %v490 = vunpack.c.l.b16 %v332
      %v491 = vunpack.c.l.b16 %v333
      %v492 = vunpack.c.l.b16 %v334
      %v493 = vunpack.c.l.b16 %v335
      %v494 = vunpack.c.l.b16 %v336
      %v495 = vunpack.c.l.b16 %v337
      %v496 = vunpack.c.l.b16 %v338
      %v497 = vunpack.c.l.b16 %v339
      %v498 = vunpack.c.l.b16 %v340
      %v499 = vunpack.c.l.b16 %v341
      %v500 = vunpack.c.l.b16 %v342
      %v501 = vunpack.c.l.b16 %v343
      %v502 = vunpack.c.l.b16 %v344
      %v503 = vunpack.c.l.b16 %v345
      %v504 = vunpack.c.l.b16 %v346
      %v505 = vunpack.c.l.b16 %v347
      %v506 = vunpack.c.l.b16 %v348
      %v507 = vunpack.c.l.b16 %v349
      %v508 = vunpack.c.l.b16 %v350
      %v509 = vunpack.c.l.b16 %v351
      %v510 = vunpack.c.l.b16 %v352
      %v511 = vunpack.c.l.b16 %v353
      %v512 = vunpack.c.l.b16 %v354
      %v513 = vunpack.c.l.b16 %v355
      %v514 = vunpack.c.l.b16 %v356
      %v515 = vunpack.c.l.b16 %v357
      %v516 = vunpack.c.l.b16 %v358
      %v517 = vunpack.c.l.b16 %v359
      %v518 = vunpack.c.l.b16 %v360
      %v519 = vunpack.c.l.b16 %v361
      %v520 = vunpack.c.l.b16 %v362
      %v521 = vunpack.c.l.b16 %v363
      %v522 = vunpack.c.l.b16 %v364
      %v523 = vunpack.c.l.b16 %v365
      %v524 = vunpack.c.l.b16 %v366
      %v525 = vunpack.c.l.b16 %v367
      %v526 = vunpack.c.l.b16 %v368
      %v527 = vunpack.c.l.b16 %v369
      %v528 = vunpack.c.l.b16 %v370
      %v529 = vunpack.c.l.b16 %v371
      %v530 = vunpack.c.l.b16 %v372
      %v531 = vunpack.c.l.b16 %v373
      %v532 = vunpack.c.l.b16 %v374
      %v533 = vunpack.c.l.b16 %v375
      %v534 = vunpack.c.l.b16 %v376
      %v535 = vpack.c.b16 %v464, %v463
      %v536 = vpack.c.b16 %v466, %v465
      %v537 = vpack.c.b16 %v468, %v467
      %v538 = vpack.c.b16 %v470, %v469
      %v539 = vpack.c.b16 %v472, %v471
      %v540 = vpack.c.b16 %v474, %v473
      %v541 = vpack.c.b16 %v476, %v475
      %v542 = vpack.c.b16 %v478, %v477
      %v543 = vpack.c.b16 %v480, %v479
      %v544 = vpack.c.b16 %v482, %v481
      %v545 = vpack.c.b16 %v484, %v483
      %v546 = vpack.c.b16 %v486, %v485
      %v547 = vpack.c.b16 %v488, %v487
      %v548 = vpack.c.b16 %v490, %v489
      %v549 = vpack.c.b16 %v492, %v491
      %v550 = vpack.c.b16 %v494, %v493
      %v551 = vpack.c.b16 %v496, %v495
      %v552 = vpack.c.b16 %v498, %v497
      %v553 = vpack.c.b16 %v500, %v499
      %v554 = vpack.c.b16 %v502, %v501
      %v555 = vpack.c.b16 %v504, %v503
      %v556 = vpack.c.b16 %v506, %v505
      %v557 = vpack.c.b16 %v508, %v507
      %v558 = vpack.c.b16 %v510, %v509
      %v559 = vpack.c.b16 %v512, %v511
      %v560 = vpack.c.b16 %v514, %v513
      %v561 = vpack.c.b16 %v516, %v515
      %v562 = vpack.c.b16 %v518, %v517
      %v563 = vpack.c.b16 %v520, %v519
      %v564 = vpack.c.b16 %v522, %v521
      %v565 = vpack.c.b16 %v524, %v523
      %v566 = vpack.c.b16 %v526, %v525
      %v567 = vpack.c.b16 %v528, %v527
      %v568 = vpack.c.b16 %v530, %v529
      %v569 = vpack.c.b16 %v532, %v531
      %v570 = vpack.c.b16 %v534, %v533
      %vm607 = vcmask 523264
      %v608 = vsel %vm607, %v386, 0
      %610 = vmatpush.bf16.msra.mxu0 %v542
      %611 = vmatpush.bf16.msra.mxu0 %v541
      %612 = vmatpush.bf16.msra.mxu0 %v540
      %613 = vmatpush.bf16.msra.mxu0 %v539
      %614 = vmatpush.bf16.msra.mxu0 %v538
      %615 = vmatpush.bf16.msra.mxu0 %v537
      %616 = vmatpush.bf16.msra.mxu0 %v536
      %617 = vmatpush.bf16.msra.mxu0 %v535
      %618 = vmatmul.bf16.gmra.mxu0 %v382
      %v619 = vpop.f32.mrf.mxu0
      %v620 = vadd.f32 0.0, %v619
      %v621 = vpop.f32.mrf.mxu0
      %622 = vdwg.mxu0
      %623 = vmatpush.bf16.msra.mxu0 %v550
      %624 = vmatpush.bf16.msra.mxu0 %v549
      %625 = vmatpush.bf16.msra.mxu0 %v548
      %626 = vmatpush.bf16.msra.mxu0 %v547
      %627 = vmatpush.bf16.msra.mxu0 %v546
      %628 = vmatpush.bf16.msra.mxu0 %v545
      %629 = vmatpush.bf16.msra.mxu0 %v544
      %630 = vmatpush.bf16.msra.mxu0 %v543
      %631 = vmatmul.bf16.gmra.mxu0 %v383
      %v632 = vpop.f32.mrf.mxu0
      %v633 = vadd.f32 %v620, %v632
      %v634 = vpop.f32.mrf.mxu0
      %635 = vdwg.mxu0
      %636 = vmatpush.bf16.msra.mxu0 %v558
      %637 = vmatpush.bf16.msra.mxu0 %v557
      %638 = vmatpush.bf16.msra.mxu0 %v556
      %639 = vmatpush.bf16.msra.mxu0 %v555
      %640 = vmatpush.bf16.msra.mxu0 %v554
      %641 = vmatpush.bf16.msra.mxu0 %v553
      %642 = vmatpush.bf16.msra.mxu0 %v552
      %643 = vmatpush.bf16.msra.mxu0 %v551
      %644 = vmatmul.bf16.gmra.mxu0 %v384
      %v645 = vpop.f32.mrf.mxu0
      %v646 = vadd.f32 %v633, %v645
      %v647 = vpop.f32.mrf.mxu0
      %648 = vdwg.mxu0
      %649 = vmatpush.bf16.msra.mxu0 %v566
      %650 = vmatpush.bf16.msra.mxu0 %v565
      %651 = vmatpush.bf16.msra.mxu0 %v564
      %652 = vmatpush.bf16.msra.mxu0 %v563
      %653 = vmatpush.bf16.msra.mxu0 %v562
      %654 = vmatpush.bf16.msra.mxu0 %v561
      %655 = vmatpush.bf16.msra.mxu0 %v560
      %656 = vmatpush.bf16.msra.mxu0 %v559
      %657 = vmatmul.bf16.gmra.mxu0 %v385
      %v658 = vpop.f32.mrf.mxu0
      %v659 = vadd.f32 %v646, %v658
      %v660 = vpop.f32.mrf.mxu0
      %661 = vdwg.mxu0
      %662 = vmatpush.bf16.msra.mxu0 0
      %663 = vmatpush.bf16.msra.mxu0 0
      %664 = vmatpush.bf16.msra.mxu0 0
      %665 = vmatpush.bf16.msra.mxu0 0
      %666 = vmatpush.bf16.msra.mxu0 %v570
      %667 = vmatpush.bf16.msra.mxu0 %v569
      %668 = vmatpush.bf16.msra.mxu0 %v568
      %669 = vmatpush.bf16.msra.mxu0 %v567
      %670 = vmatmul.bf16.gmra.mxu0 %v608
      %v671 = vpop.f32.mrf.mxu0
      %v672 = vadd.f32 %v659, %v671
      %v673 = vpop.f32.mrf.mxu0
      %674 = vdwg.mxu0
      %v675 = vld [vmem:[%s2] sm:$0x1]
      %v677 = vperm.slane %v675, 0
      %v679 = vmul.f32 %v672, %v677
      %v680 = vld [vmem:[%s3] sm:$0x1]
      %v682 = vperm.slane %v680, 0
      %v684 = vadd.f32 %v679, %v682
      %v685 = vmax.f32 %v684, 0.0
      %vm686 = vcmask 1043456
      %v687 = vsel %vm686, %v685, 0.0
      %v688 = vrot.slane %v687, 4
      %v689 = vadd.f32 %v687, %v688
      %v690 = vrot.slane %v689, 2
      %v691 = vadd.f32 %v689, %v690
      %v692 = vrot.slane %v691, 1
      %v693 = vadd.f32 %v691, %v692
      %v694 = vmul.f32 %v693, 0.25
      %v695 = vpack.c.bf16 %v694, %v694
      %v696 = vld [vmem:[%s4] sm:$0xf]
      %v697 = vld [vmem:[%s4 + $0x4] sm:$0xf]
      %v698 = vld [vmem:[%s4 + $0x8] sm:$0xf]
      %v699 = vld [vmem:[%s4 + $0xc] sm:$0xf]
      %v700 = vld [vmem:[%s4 + $0x10] sm:$0xf]
      %v701 = vld [vmem:[%s4 + $0x14] sm:$0xf]
      %v702 = vld [vmem:[%s4 + $0x18] sm:$0xf]
      %v703 = vld [vmem:[%s4 + $0x1c] sm:$0xf]
      %v704 = vld [vmem:[%s4 + $0x20] sm:$0xf]
      %v705 = vld [vmem:[%s4 + $0x24] sm:$0xf]
      %v706 = vld [vmem:[%s4 + $0x28] sm:$0xf]
      %v707 = vld [vmem:[%s4 + $0x2c] sm:$0xf]
      %v708 = vld [vmem:[%s4 + $0x30] sm:$0xf]
      %v709 = vld [vmem:[%s4 + $0x34] sm:$0xf]
      %v710 = vld [vmem:[%s4 + $0x38] sm:$0xf]
      %v711 = vld [vmem:[%s4 + $0x3c] sm:$0xf]
      %v712 = vld [vmem:[%s5] sm:$0x1]
      %v729 = vunpack.c.l.b16 %v696
      %v730 = vunpack.c.l.b16 %v697
      %v731 = vunpack.c.l.b16 %v698
      %v732 = vunpack.c.l.b16 %v699
      %v733 = vunpack.c.l.b16 %v700
      %v734 = vunpack.c.l.b16 %v701
      %v735 = vunpack.c.l.b16 %v702
      %v736 = vunpack.c.l.b16 %v703
      %v737 = vunpack.c.l.b16 %v704
      %v738 = vunpack.c.l.b16 %v705
      %v739 = vunpack.c.l.b16 %v706
      %v740 = vunpack.c.l.b16 %v707
      %v741 = vunpack.c.l.b16 %v708
      %v742 = vunpack.c.l.b16 %v709
      %v743 = vunpack.c.l.b16 %v710
      %v744 = vunpack.c.l.b16 %v711
      %v745 = vpack.c.b16 %v730, %v729
      %v746 = vpack.c.b16 %v732, %v731
      %v747 = vpack.c.b16 %v734, %v733
      %v748 = vpack.c.b16 %v736, %v735
      %v749 = vpack.c.b16 %v738, %v737
      %v750 = vpack.c.b16 %v740, %v739
      %v751 = vpack.c.b16 %v742, %v741
      %v752 = vpack.c.b16 %v744, %v743
      %761 = vmatpush.bf16.msra.mxu0 %v752
      %762 = vmatpush.bf16.msra.mxu0 %v751
      %763 = vmatpush.bf16.msra.mxu0 %v750
      %764 = vmatpush.bf16.msra.mxu0 %v749
      %765 = vmatpush.bf16.msra.mxu0 %v748
      %766 = vmatpush.bf16.msra.mxu0 %v747
      %767 = vmatpush.bf16.msra.mxu0 %v746
      %768 = vmatpush.bf16.msra.mxu0 %v745
      %769 = vmatmul.bf16.gmra.mxu0 %v695
      %v770 = vpop.f32.mrf.mxu0
      %v771 = vadd.f32 %v712, %v770
      %v772 = vpop.f32.mrf.mxu0
      %773 = vdwg.mxu0
      %v774 = vmax.f32 %v771, 0.0
      %v775 = vpack.c.bf16 %v774, %v774
      %v776 = vld [vmem:[%s6] sm:$0xf]
      %v777 = vld [vmem:[%s6 + $0x4] sm:$0xf]
      %v778 = vld [vmem:[%s6 + $0x8] sm:$0xf]
      %v779 = vld [vmem:[%s6 + $0xc] sm:$0xf]
      %v780 = vld [vmem:[%s6 + $0x10] sm:$0xf]
      %v781 = vld [vmem:[%s6 + $0x14] sm:$0xf]
      %v782 = vld [vmem:[%s6 + $0x18] sm:$0xf]
      %v783 = vld [vmem:[%s6 + $0x1c] sm:$0xf]
      %v784 = vld [vmem:[%s7] sm:$0x1]
      %v793 = vunpack.c.l.b16 %v776
      %v794 = vunpack.c.l.b16 %v777
      %v795 = vunpack.c.l.b16 %v778
      %v796 = vunpack.c.l.b16 %v779
      %v797 = vunpack.c.l.b16 %v780
      %v798 = vunpack.c.l.b16 %v781
      %v799 = vunpack.c.l.b16 %v782
      %v800 = vunpack.c.l.b16 %v783
      %v801 = vpack.c.b16 %v794, %v793
      %v802 = vpack.c.b16 %v796, %v795
      %v803 = vpack.c.b16 %v798, %v797
      %v804 = vpack.c.b16 %v800, %v799
      %v810 = vsel %vm607, %v775, 0
      %812 = vmatpush.bf16.msra.mxu0 0
      %813 = vmatpush.bf16.msra.mxu0 0
      %814 = vmatpush.bf16.msra.mxu0 0
      %815 = vmatpush.bf16.msra.mxu0 0
      %816 = vmatpush.bf16.msra.mxu0 %v804
      %817 = vmatpush.bf16.msra.mxu0 %v803
      %818 = vmatpush.bf16.msra.mxu0 %v802
      %819 = vmatpush.bf16.msra.mxu0 %v801
      %820 = vmatmul.bf16.gmra.mxu0 %v810
      %v821 = vpop.f32.mrf.mxu0
      %v822 = vadd.f32 %v784, %v821
      %v823 = vpop.f32.mrf.mxu0
      %824 = vdwg.mxu0
      %vm825 = vcmask 319488
      %826 = vst.msk [vmem:[%s301] sm:$0x1] %vm825, %v822
      %p827 = scmp.lt.s32.totalorder %s19, 1
      %s828 = scalar_select %p827, %s19, 1
      %s829 = scalar_lea.vmem %s8, %s828
      // Predicated region
      $region53: #{localization_network.7} parent=51 // pred_check
        %p830 = pneg %p210
      $region54: #{localization_network.7} parent=51 // pred_check_branch
        %832 = sbr.rel (%p830) target = $region56
      $region55: #{localization_network.7} parent=51 // pred_region
        _
      $region56: #{localization_network.7} parent=51 // pred_fallthru
        _
    $region52: #{localization_network.7} parent=5 // pred_fallthru
      _
    %p833 = scmp.le.s32.totalorder 2, %s14
    // Predicated region
    $region57: #{localization_network.7} parent=5 // pred_check
      %p834 = pneg %p833
    $region58: #{localization_network.7} parent=5 // pred_check_branch
      %836 = sbr.rel (%p834) target = $region60
    $region59: #{localization_network.7} parent=5 // pred_region
      %s837 = ssub.s32 %s14, 2
      // Predicated region
      $region61: #{localization_network.7} parent=59 // pred_check
        %p838 = pneg %p216
      $region62: #{localization_network.7} parent=59 // pred_check_branch
        %840 = sbr.rel (%p838) target = $region64
      $region63: #{localization_network.7} parent=59 // pred_region
        %p841 = scmp.lt.s32.totalorder %s20, 1
        %s842 = scalar_select %p841, %s20, 1
        %s843 = scalar_lea.vmem %s8, %s842
      $region64: #{localization_network.7} parent=59 // pred_fallthru
        _
    $region60: #{localization_network.7} parent=5 // pred_fallthru
      _
  $region6: #{localization_network.7} parent=0 // loop_footer
    %s18 = sadd.s32 1, %s14
  $region7: #{localization_network.7} parent=0 // loop_footer_branch
    %13 = sbr.rel target = $region3
  $region8: #{localization_network.7} parent=0 // loop_exit
    _

</llo_original>
